<compile_context>
chip_gen: v6e
topology: v6e:2x2x1
jax: 0.10.0
libtpu: 0.0.40
codegen_flags: <defaults>
</compile_context>

<pallas_src>
import jax
import jax.numpy as jnp
from jax.experimental import pallas as pl
from jax.experimental.pallas import tpu as pltpu

_UNROLLED_T_MAX = 32  # beyond this, use lax.fori_loop(unroll=8)


def _round_up(v, m):
    return (v + m - 1) // m * m


def _make_lstm_kernel(T, Bp, Hp):
    """Build the kernel as a closure over the static (padded) sizes T, Bp, Hp."""

    def kernel(x_ref, w_ih_ref, w_hh_ref, b_ref, c0_ref, out_ref, pre_ref):
        # x_ref:    (T*Bp, D)    time-major flattened inputs (row t*Bp + b)
        # w_ih_ref: (D, 4*Hp)    input->gates weights (pre-transposed, i/f/o *0.5)
        # w_hh_ref: (Hp, 4*Hp)   hidden->gates weights (pre-transposed, i/f/o *0.5)
        # b_ref:    (1, 4*Hp)    combined bias b_ih + b_hh (i/f/o *0.5), f32
        # c0_ref:   (Bp, Hp)     initial cell state (torch.randn stand-in), f32
        # out_ref:  (Bp, Hp)     final cell state (what LSTMBody.forward returns)
        # pre_ref:  (T*Bp, 4*Hp) f32 VMEM scratch: hoisted input projection
        w_hh = w_hh_ref[...]  # loaded once, reused every step (MXU-input dtype)

        # Hoisted out of the recurrence: ONE MXU matmul for all T steps.
        pre_ref[...] = (
            jnp.dot(x_ref[...], w_ih_ref[...], preferred_element_type=jnp.float32)
            + b_ref[...])

        def pre_slice(t):
            # Bp is a multiple of 8 -> every slice starts tile-aligned.
            start = t * Bp if isinstance(t, int) else pl.multiple_of(t * Bp, 8)
            return pre_ref[pl.ds(start, Bp), :]

        def split_gates(t_all):
            # i/f/o columns carry gate/2 (wrapper pre-scale), so the single
            # whole-vreg tanh gives sigmoid(z) = 0.5 * (1 + tanh(z/2)).
            # All slices are 128-lane aligned (Hp % 128 == 0) -> pure VPU.
            i_g = 0.5 * (1.0 + t_all[:, 0 * Hp:1 * Hp])
            f_g = 0.5 * (1.0 + t_all[:, 1 * Hp:2 * Hp])
            g_g = t_all[:, 2 * Hp:3 * Hp]
            o_g = 0.5 * (1.0 + t_all[:, 3 * Hp:4 * Hp])
            return i_g, f_g, g_g, o_g

        def step_full(gates, c):
            t_all = jnp.tanh(gates)                 # single EUP pass over (Bp,4Hp)
            i_g, f_g, g_g, o_g = split_gates(t_all)
            c_new = f_g * c + i_g * g_g
            h_new = o_g * jnp.tanh(c_new)
            return h_new, c_new

        def step_c_only(gates, c):
            # Final step: h is dead (module returns c_T); skip tanh(c_new) + o.
            t_all = jnp.tanh(gates)
            i_g, f_g, g_g, _ = split_gates(t_all)
            return f_g * c + i_g * g_g

        def recur_gates(h, t):
            return pre_slice(t) + jnp.dot(
                h.astype(w_hh.dtype), w_hh, preferred_element_type=jnp.float32)

        c0 = c0_ref[...]
        if T == 1:
            out_ref[...] = step_c_only(pre_slice(0), c0)
            return

        # t = 0 peeled: h_0 == 0, so its recurrent matmul vanishes entirely.
        h, c = step_full(pre_slice(0), c0)

        if T <= _UNROLLED_T_MAX:
            # Fully unrolled at trace time: LLO can interleave MXU push / EUP /
            # VPU gate math of adjacent steps.
            for t in range(1, T - 1):
                h, c = step_full(recur_gates(h, t), c)
        else:
            # Bound vreg pressure / compile time for long sequences.
            def body(t, carry):
                h_i, c_i = carry
                return step_full(recur_gates(h_i, t), c_i)

            h, c = jax.lax.fori_loop(1, T - 1, body, (h, c), unroll=8)

        # Last step: only the cell state is live.
        out_ref[...] = step_c_only(recur_gates(h, T - 1), c)

    return kernel


def lstm_body_forward(x, w_ih, w_hh, b_ih, b_hh, c0, *, mxu_dtype=jnp.float32):
    """Pallas implementation of LSTMBody.forward.

    x:     (B, T, indim) or (T, indim)
    w_ih:  (4*hdim, indim)   w_hh: (4*hdim, hdim)
    b_ih:  (4*hdim,)         b_hh: (4*hdim,)
    c0:    (B, hdim)  -- deterministic stand-in for torch.randn(B, hdim)
    mxu_dtype: jnp.float32 (exact) or jnp.bfloat16 (faster MXU on v6e/v7x;
               gate math and the carried c/h state stay f32 either way).
    returns: (B, hdim) final cell state (== the module's returned `out`)
    """
    if x.ndim < 3:
        x = x[None]  # matches torch's x.unsqueeze(0)
    B, T, D = x.shape
    H = w_hh.shape[1]
    Bp = _round_up(B, 8)     # sublane alignment of per-step pre slices
    Hp = _round_up(H, 128)   # lane alignment of each gate block

    def prep_gate_rows(w):
        # w: (4H, K) -> (4Hp, K).  Pre-scale i/f/o blocks by 0.5 (sigmoid via
        # tanh) and zero-pad every gate block to Hp rows.  PyTorch gate order
        # is i, f, g, o; only g (index 2) keeps full scale.
        blocks = []
        for g in range(4):
            blk = w[g * H:(g + 1) * H]
            if g != 2:
                blk = blk * 0.5
            blocks.append(jnp.pad(blk, ((0, Hp - H), (0, 0))))
        return jnp.concatenate(blocks, axis=0)

    w_ih_p = jnp.transpose(prep_gate_rows(w_ih.astype(jnp.float32)))        # (D, 4Hp)
    w_hh_cols = jnp.pad(w_hh.astype(jnp.float32), ((0, 0), (0, Hp - H)))    # pad h-in dim
    w_hh_p = jnp.transpose(prep_gate_rows(w_hh_cols))                       # (Hp, 4Hp)
    b = jnp.transpose(
        prep_gate_rows((b_ih + b_hh).astype(jnp.float32)[:, None]))         # (1, 4Hp)

    # Time-major flattened, batch zero-padded input: row t*Bp + b == x[b, t, :].
    # TODO(synk): for large T*B*D stream x per time-chunk via a BlockSpec grid
    # instead of this wrapper transpose (extra full-HBM pass).
    x_tm = jnp.pad(jnp.transpose(x.astype(jnp.float32), (1, 0, 2)),
                   ((0, 0), (0, Bp - B), (0, 0))).reshape(T * Bp, D)
    c0_p = jnp.pad(c0.astype(jnp.float32), ((0, Bp - B), (0, Hp - H)))

    # bf16 MXU-input cast (v6e/v7x); bias / c0 / gate math stay f32.
    x_tm = x_tm.astype(mxu_dtype)
    w_ih_p = w_ih_p.astype(mxu_dtype)
    w_hh_p = w_hh_p.astype(mxu_dtype)

    # Explicit VMEM budget (v5e default scoped limit is only 16 MiB); keep well
    # under v7x's 64 MiB physical VMEM.
    isz = jnp.dtype(mxu_dtype).itemsize
    needed = (T * Bp * D * isz            # x
              + D * 4 * Hp * isz          # w_ih
              + Hp * 4 * Hp * isz         # w_hh
              + 4 * Hp * 4                # bias
              + 2 * Bp * Hp * 4           # c0 + out
              + T * Bp * 4 * Hp * 4)      # pre scratch
    vmem_limit = int(min(max(2 * needed + (4 << 20), 32 << 20), 56 << 20))

    vmem = pl.BlockSpec(memory_space=pltpu.MemorySpace.VMEM)
    out_p = pl.pallas_call(
        _make_lstm_kernel(T, Bp, Hp),
        out_shape=jax.ShapeDtypeStruct((Bp, Hp), jnp.float32),
        in_specs=[vmem, vmem, vmem, vmem, vmem],
        out_specs=vmem,
        scratch_shapes=[pltpu.VMEM((T * Bp, 4 * Hp), jnp.float32)],
        compiler_params=pltpu.CompilerParams(vmem_limit_bytes=vmem_limit),
    )(x_tm, w_ih_p, w_hh_p, b, c0_p)
    return out_p[:B, :H]


def _lstm_ref(x, w_ih, w_hh, b_ih, b_hh, c0):
    """Pure-JAX reference replicating LSTMBody.forward (for a fixed c0)."""
    if x.ndim < 3:
        x = x[None]
    B, T, _ = x.shape
    H = w_hh.shape[1]
    h = jnp.zeros((B, H), jnp.float32)
    c = c0.astype(jnp.float32)
    for t in range(T):
        gates = x[:, t, :] @ w_ih.T + h @ w_hh.T + b_ih + b_hh
        i_g = jax.nn.sigmoid(gates[:, 0 * H:1 * H])
        f_g = jax.nn.sigmoid(gates[:, 1 * H:2 * H])
        g_g = jnp.tanh(gates[:, 2 * H:3 * H])
        o_g = jax.nn.sigmoid(gates[:, 3 * H:4 * H])
        c = f_g * c + i_g * g_g
        h = o_g * jnp.tanh(c)
    return c


if __name__ == "__main__":
    # Small shapes consistent with the module: batch=2, seq=8, indim=16, hdim=32.
    B, T, INDIM, HDIM = 2, 8, 16, 32

    key = jax.random.PRNGKey(0)
    kx, kwih, kwhh, kbih, kbhh, kc0 = jax.random.split(key, 6)

    # Deterministic parameter init, same shapes/scale as nn.LSTMCell
    # (uniform in [-1/sqrt(hdim), 1/sqrt(hdim)]).
    bound = 1.0 / (HDIM ** 0.5)
    w_ih = jax.random.uniform(kwih, (4 * HDIM, INDIM), jnp.float32, -bound, bound)
    w_hh = jax.random.uniform(kwhh, (4 * HDIM, HDIM), jnp.float32, -bound, bound)
    b_ih = jax.random.uniform(kbih, (4 * HDIM,), jnp.float32, -bound, bound)
    b_hh = jax.random.uniform(kbhh, (4 * HDIM,), jnp.float32, -bound, bound)

    x = jax.random.normal(kx, (B, T, INDIM), jnp.float32)
    # TODO(synk): torch.randn(B, hdim) in forward is stochastic per-call; replicated
    # here as a deterministic jax.random.normal draw passed into the kernel.
    c0 = jax.random.normal(kc0, (B, HDIM), jnp.float32)

    ref = _lstm_ref(x, w_ih, w_hh, b_ih, b_hh, c0)

    # Exact (f32 MXU) path -- the default.
    out = lstm_body_forward(x, w_ih, w_hh, b_ih, b_hh, c0)
    jax.block_until_ready(out)
    assert out.shape == (B, HDIM)
    assert jnp.allclose(out, ref, rtol=2e-3, atol=2e-3), (
        f"f32 path max abs err {jnp.max(jnp.abs(out - ref))}")

    # bf16-MXU-input path (recommended on v6e/v7x); gate math stays f32, so the
    # error is just bf16 rounding accumulated over T steps -> loose tolerance.
    out_bf16 = lstm_body_forward(x, w_ih, w_hh, b_ih, b_hh, c0,
                                 mxu_dtype=jnp.bfloat16)
    jax.block_until_ready(out_bf16)
    assert jnp.allclose(out_bf16, ref, rtol=1e-1, atol=1e-1), (
        f"bf16 path max abs err {jnp.max(jnp.abs(out_bf16 - ref))}")

    print("KERNEL_OK")
</pallas_src>

<mosaic_0001>
module attributes {stable_mosaic.version = 11 : i64} {
  func.func @kernel(%arg0: memref<64x16xf32, #tpu.memory_space<vmem>>, %arg1: memref<16x512xf32, #tpu.memory_space<vmem>>, %arg2: memref<128x512xf32, #tpu.memory_space<vmem>>, %arg3: memref<1x512xf32, #tpu.memory_space<vmem>>, %arg4: memref<8x128xf32, #tpu.memory_space<vmem>>, %arg5: memref<8x128xf32, #tpu.memory_space<vmem>>, %arg6: memref<64x512xf32, #tpu.memory_space<vmem>>) attributes {dimension_semantics = [], scalar_prefetch = 0 : i64, scratch_operands = 1 : i64, tpu.core_type = #tpu.core_type<tc>} {
    %c0 = arith.constant 0 : index
    %c0_0 = arith.constant 0 : index
    %0 = vector.load %arg2[%c0, %c0_0] : memref<128x512xf32, #tpu.memory_space<vmem>>, vector<128x512xf32>
    %c0_1 = arith.constant 0 : index
    %c0_2 = arith.constant 0 : index
    %1 = vector.load %arg0[%c0_1, %c0_2] : memref<64x16xf32, #tpu.memory_space<vmem>>, vector<64x16xf32>
    %c0_3 = arith.constant 0 : index
    %c0_4 = arith.constant 0 : index
    %2 = vector.load %arg1[%c0_3, %c0_4] : memref<16x512xf32, #tpu.memory_space<vmem>>, vector<16x512xf32>
    %cst = arith.constant dense<0.000000e+00> : vector<64x512xf32>
    %3 = tpu.matmul %1, %2, %cst {dimension_numbers = #tpu.dot_dimension_numbers<[1], [0], [0], [1], [0, 0, 1, 1], [], []>} : vector<64x16xf32>, vector<16x512xf32>, vector<64x512xf32> -> vector<64x512xf32>
    %c0_5 = arith.constant 0 : index
    %c0_6 = arith.constant 0 : index
    %4 = vector.load %arg3[%c0_5, %c0_6] : memref<1x512xf32, #tpu.memory_space<vmem>>, vector<1x512xf32>
    %5 = vector.broadcast %4 : vector<1x512xf32> to vector<64x512xf32>
    %6 = arith.addf %3, %5 : vector<64x512xf32>
    %c0_7 = arith.constant 0 : index
    %c0_8 = arith.constant 0 : index
    %7 = vector.load %arg6[%c0_7, %c0_8] : memref<64x512xf32, #tpu.memory_space<vmem>>, vector<64x512xf32>
    tpu.vector_store %arg6[%c0_7, %c0_8], %6 {strides = array<i32>} : memref<64x512xf32, #tpu.memory_space<vmem>>, vector<64x512xf32>,
    %c0_9 = arith.constant 0 : index
    %c0_10 = arith.constant 0 : index
    %8 = vector.load %arg4[%c0_9, %c0_10] : memref<8x128xf32, #tpu.memory_space<vmem>>, vector<8x128xf32>
    %c0_11 = arith.constant 0 : index
    %c0_12 = arith.constant 0 : index
    %9 = vector.load %arg6[%c0_11, %c0_12] : memref<64x512xf32, #tpu.memory_space<vmem>>, vector<8x512xf32>
    %10 = math.tanh %9 : vector<8x512xf32>
    %11 = vector.extract_strided_slice %10 {offsets = [0, 0], sizes = [8, 128], strides = [1, 1]} : vector<8x512xf32> to vector<8x128xf32>
    %cst_13 = arith.constant 1.000000e+00 : f32
    %12 = vector.broadcast %cst_13 : f32 to vector<8x128xf32>
    %13 = arith.addf %12, %11 : vector<8x128xf32>
    %cst_14 = arith.constant 5.000000e-01 : f32
    %14 = vector.broadcast %cst_14 : f32 to vector<8x128xf32>
    %15 = arith.mulf %14, %13 : vector<8x128xf32>
    %16 = vector.extract_strided_slice %10 {offsets = [0, 128], sizes = [8, 128], strides = [1, 1]} : vector<8x512xf32> to vector<8x128xf32>
    %cst_15 = arith.constant 1.000000e+00 : f32
    %17 = vector.broadcast %cst_15 : f32 to vector<8x128xf32>
    %18 = arith.addf %17, %16 : vector<8x128xf32>
    %cst_16 = arith.constant 5.000000e-01 : f32
    %19 = vector.broadcast %cst_16 : f32 to vector<8x128xf32>
    %20 = arith.mulf %19, %18 : vector<8x128xf32>
    %21 = vector.extract_strided_slice %10 {offsets = [0, 256], sizes = [8, 128], strides = [1, 1]} : vector<8x512xf32> to vector<8x128xf32>
    %22 = vector.extract_strided_slice %10 {offsets = [0, 384], sizes = [8, 128], strides = [1, 1]} : vector<8x512xf32> to vector<8x128xf32>
    %cst_17 = arith.constant 1.000000e+00 : f32
    %23 = vector.broadcast %cst_17 : f32 to vector<8x128xf32>
    %24 = arith.addf %23, %22 : vector<8x128xf32>
    %cst_18 = arith.constant 5.000000e-01 : f32
    %25 = vector.broadcast %cst_18 : f32 to vector<8x128xf32>
    %26 = arith.mulf %25, %24 : vector<8x128xf32>
    %27 = arith.mulf %20, %8 : vector<8x128xf32>
    %28 = arith.mulf %15, %21 : vector<8x128xf32>
    %29 = arith.addf %27, %28 : vector<8x128xf32>
    %30 = math.tanh %29 : vector<8x128xf32>
    %31 = arith.mulf %26, %30 : vector<8x128xf32>
    %c8 = arith.constant 8 : index
    %c0_19 = arith.constant 0 : index
    %32 = vector.load %arg6[%c8, %c0_19] : memref<64x512xf32, #tpu.memory_space<vmem>>, vector<8x512xf32>
    %cst_20 = arith.constant dense<0.000000e+00> : vector<8x512xf32>
    %33 = tpu.matmul %31, %0, %cst_20 {dimension_numbers = #tpu.dot_dimension_numbers<[1], [0], [0], [1], [0, 0, 1, 1], [], []>} : vector<8x128xf32>, vector<128x512xf32>, vector<8x512xf32> -> vector<8x512xf32>
    %34 = arith.addf %32, %33 : vector<8x512xf32>
    %35 = math.tanh %34 : vector<8x512xf32>
    %36 = vector.extract_strided_slice %35 {offsets = [0, 0], sizes = [8, 128], strides = [1, 1]} : vector<8x512xf32> to vector<8x128xf32>
    %cst_21 = arith.constant 1.000000e+00 : f32
    %37 = vector.broadcast %cst_21 : f32 to vector<8x128xf32>
    %38 = arith.addf %37, %36 : vector<8x128xf32>
    %cst_22 = arith.constant 5.000000e-01 : f32
    %39 = vector.broadcast %cst_22 : f32 to vector<8x128xf32>
    %40 = arith.mulf %39, %38 : vector<8x128xf32>
    %41 = vector.extract_strided_slice %35 {offsets = [0, 128], sizes = [8, 128], strides = [1, 1]} : vector<8x512xf32> to vector<8x128xf32>
    %cst_23 = arith.constant 1.000000e+00 : f32
    %42 = vector.broadcast %cst_23 : f32 to vector<8x128xf32>
    %43 = arith.addf %42, %41 : vector<8x128xf32>
    %cst_24 = arith.constant 5.000000e-01 : f32
    %44 = vector.broadcast %cst_24 : f32 to vector<8x128xf32>
    %45 = arith.mulf %44, %43 : vector<8x128xf32>
    %46 = vector.extract_strided_slice %35 {offsets = [0, 256], sizes = [8, 128], strides = [1, 1]} : vector<8x512xf32> to vector<8x128xf32>
    %47 = vector.extract_strided_slice %35 {offsets = [0, 384], sizes = [8, 128], strides = [1, 1]} : vector<8x512xf32> to vector<8x128xf32>
    %cst_25 = arith.constant 1.000000e+00 : f32
    %48 = vector.broadcast %cst_25 : f32 to vector<8x128xf32>
    %49 = arith.addf %48, %47 : vector<8x128xf32>
    %cst_26 = arith.constant 5.000000e-01 : f32
    %50 = vector.broadcast %cst_26 : f32 to vector<8x128xf32>
    %51 = arith.mulf %50, %49 : vector<8x128xf32>
    %52 = arith.mulf %45, %29 : vector<8x128xf32>
    %53 = arith.mulf %40, %46 : vector<8x128xf32>
    %54 = arith.addf %52, %53 : vector<8x128xf32>
    %55 = math.tanh %54 : vector<8x128xf32>
    %56 = arith.mulf %51, %55 : vector<8x128xf32>
    %c16 = arith.constant 16 : index
    %c0_27 = arith.constant 0 : index
    %57 = vector.load %arg6[%c16, %c0_27] : memref<64x512xf32, #tpu.memory_space<vmem>>, vector<8x512xf32>
    %cst_28 = arith.constant dense<0.000000e+00> : vector<8x512xf32>
    %58 = tpu.matmul %56, %0, %cst_28 {dimension_numbers = #tpu.dot_dimension_numbers<[1], [0], [0], [1], [0, 0, 1, 1], [], []>} : vector<8x128xf32>, vector<128x512xf32>, vector<8x512xf32> -> vector<8x512xf32>
    %59 = arith.addf %57, %58 : vector<8x512xf32>
    %60 = math.tanh %59 : vector<8x512xf32>
    %61 = vector.extract_strided_slice %60 {offsets = [0, 0], sizes = [8, 128], strides = [1, 1]} : vector<8x512xf32> to vector<8x128xf32>
    %cst_29 = arith.constant 1.000000e+00 : f32
    %62 = vector.broadcast %cst_29 : f32 to vector<8x128xf32>
    %63 = arith.addf %62, %61 : vector<8x128xf32>
    %cst_30 = arith.constant 5.000000e-01 : f32
    %64 = vector.broadcast %cst_30 : f32 to vector<8x128xf32>
    %65 = arith.mulf %64, %63 : vector<8x128xf32>
    %66 = vector.extract_strided_slice %60 {offsets = [0, 128], sizes = [8, 128], strides = [1, 1]} : vector<8x512xf32> to vector<8x128xf32>
    %cst_31 = arith.constant 1.000000e+00 : f32
    %67 = vector.broadcast %cst_31 : f32 to vector<8x128xf32>
    %68 = arith.addf %67, %66 : vector<8x128xf32>
    %cst_32 = arith.constant 5.000000e-01 : f32
    %69 = vector.broadcast %cst_32 : f32 to vector<8x128xf32>
    %70 = arith.mulf %69, %68 : vector<8x128xf32>
    %71 = vector.extract_strided_slice %60 {offsets = [0, 256], sizes = [8, 128], strides = [1, 1]} : vector<8x512xf32> to vector<8x128xf32>
    %72 = vector.extract_strided_slice %60 {offsets = [0, 384], sizes = [8, 128], strides = [1, 1]} : vector<8x512xf32> to vector<8x128xf32>
    %cst_33 = arith.constant 1.000000e+00 : f32
    %73 = vector.broadcast %cst_33 : f32 to vector<8x128xf32>
    %74 = arith.addf %73, %72 : vector<8x128xf32>
    %cst_34 = arith.constant 5.000000e-01 : f32
    %75 = vector.broadcast %cst_34 : f32 to vector<8x128xf32>
    %76 = arith.mulf %75, %74 : vector<8x128xf32>
    %77 = arith.mulf %70, %54 : vector<8x128xf32>
    %78 = arith.mulf %65, %71 : vector<8x128xf32>
    %79 = arith.addf %77, %78 : vector<8x128xf32>
    %80 = math.tanh %79 : vector<8x128xf32>
    %81 = arith.mulf %76, %80 : vector<8x128xf32>
    %c24 = arith.constant 24 : index
    %c0_35 = arith.constant 0 : index
    %82 = vector.load %arg6[%c24, %c0_35] : memref<64x512xf32, #tpu.memory_space<vmem>>, vector<8x512xf32>
    %cst_36 = arith.constant dense<0.000000e+00> : vector<8x512xf32>
    %83 = tpu.matmul %81, %0, %cst_36 {dimension_numbers = #tpu.dot_dimension_numbers<[1], [0], [0], [1], [0, 0, 1, 1], [], []>} : vector<8x128xf32>, vector<128x512xf32>, vector<8x512xf32> -> vector<8x512xf32>
    %84 = arith.addf %82, %83 : vector<8x512xf32>
    %85 = math.tanh %84 : vector<8x512xf32>
    %86 = vector.extract_strided_slice %85 {offsets = [0, 0], sizes = [8, 128], strides = [1, 1]} : vector<8x512xf32> to vector<8x128xf32>
    %cst_37 = arith.constant 1.000000e+00 : f32
    %87 = vector.broadcast %cst_37 : f32 to vector<8x128xf32>
    %88 = arith.addf %87, %86 : vector<8x128xf32>
    %cst_38 = arith.constant 5.000000e-01 : f32
    %89 = vector.broadcast %cst_38 : f32 to vector<8x128xf32>
    %90 = arith.mulf %89, %88 : vector<8x128xf32>
    %91 = vector.extract_strided_slice %85 {offsets = [0, 128], sizes = [8, 128], strides = [1, 1]} : vector<8x512xf32> to vector<8x128xf32>
    %cst_39 = arith.constant 1.000000e+00 : f32
    %92 = vector.broadcast %cst_39 : f32 to vector<8x128xf32>
    %93 = arith.addf %92, %91 : vector<8x128xf32>
    %cst_40 = arith.constant 5.000000e-01 : f32
    %94 = vector.broadcast %cst_40 : f32 to vector<8x128xf32>
    %95 = arith.mulf %94, %93 : vector<8x128xf32>
    %96 = vector.extract_strided_slice %85 {offsets = [0, 256], sizes = [8, 128], strides = [1, 1]} : vector<8x512xf32> to vector<8x128xf32>
    %97 = vector.extract_strided_slice %85 {offsets = [0, 384], sizes = [8, 128], strides = [1, 1]} : vector<8x512xf32> to vector<8x128xf32>
    %cst_41 = arith.constant 1.000000e+00 : f32
    %98 = vector.broadcast %cst_41 : f32 to vector<8x128xf32>
    %99 = arith.addf %98, %97 : vector<8x128xf32>
    %cst_42 = arith.constant 5.000000e-01 : f32
    %100 = vector.broadcast %cst_42 : f32 to vector<8x128xf32>
    %101 = arith.mulf %100, %99 : vector<8x128xf32>
    %102 = arith.mulf %95, %79 : vector<8x128xf32>
    %103 = arith.mulf %90, %96 : vector<8x128xf32>
    %104 = arith.addf %102, %103 : vector<8x128xf32>
    %105 = math.tanh %104 : vector<8x128xf32>
    %106 = arith.mulf %101, %105 : vector<8x128xf32>
    %c32 = arith.constant 32 : index
    %c0_43 = arith.constant 0 : index
    %107 = vector.load %arg6[%c32, %c0_43] : memref<64x512xf32, #tpu.memory_space<vmem>>, vector<8x512xf32>
    %cst_44 = arith.constant dense<0.000000e+00> : vector<8x512xf32>
    %108 = tpu.matmul %106, %0, %cst_44 {dimension_numbers = #tpu.dot_dimension_numbers<[1], [0], [0], [1], [0, 0, 1, 1], [], []>} : vector<8x128xf32>, vector<128x512xf32>, vector<8x512xf32> -> vector<8x512xf32>
    %109 = arith.addf %107, %108 : vector<8x512xf32>
    %110 = math.tanh %109 : vector<8x512xf32>
    %111 = vector.extract_strided_slice %110 {offsets = [0, 0], sizes = [8, 128], strides = [1, 1]} : vector<8x512xf32> to vector<8x128xf32>
    %cst_45 = arith.constant 1.000000e+00 : f32
    %112 = vector.broadcast %cst_45 : f32 to vector<8x128xf32>
    %113 = arith.addf %112, %111 : vector<8x128xf32>
    %cst_46 = arith.constant 5.000000e-01 : f32
    %114 = vector.broadcast %cst_46 : f32 to vector<8x128xf32>
    %115 = arith.mulf %114, %113 : vector<8x128xf32>
    %116 = vector.extract_strided_slice %110 {offsets = [0, 128], sizes = [8, 128], strides = [1, 1]} : vector<8x512xf32> to vector<8x128xf32>
    %cst_47 = arith.constant 1.000000e+00 : f32
    %117 = vector.broadcast %cst_47 : f32 to vector<8x128xf32>
    %118 = arith.addf %117, %116 : vector<8x128xf32>
    %cst_48 = arith.constant 5.000000e-01 : f32
    %119 = vector.broadcast %cst_48 : f32 to vector<8x128xf32>
    %120 = arith.mulf %119, %118 : vector<8x128xf32>
    %121 = vector.extract_strided_slice %110 {offsets = [0, 256], sizes = [8, 128], strides = [1, 1]} : vector<8x512xf32> to vector<8x128xf32>
    %122 = vector.extract_strided_slice %110 {offsets = [0, 384], sizes = [8, 128], strides = [1, 1]} : vector<8x512xf32> to vector<8x128xf32>
    %cst_49 = arith.constant 1.000000e+00 : f32
    %123 = vector.broadcast %cst_49 : f32 to vector<8x128xf32>
    %124 = arith.addf %123, %122 : vector<8x128xf32>
    %cst_50 = arith.constant 5.000000e-01 : f32
    %125 = vector.broadcast %cst_50 : f32 to vector<8x128xf32>
    %126 = arith.mulf %125, %124 : vector<8x128xf32>
    %127 = arith.mulf %120, %104 : vector<8x128xf32>
    %128 = arith.mulf %115, %121 : vector<8x128xf32>
    %129 = arith.addf %127, %128 : vector<8x128xf32>
    %130 = math.tanh %129 : vector<8x128xf32>
    %131 = arith.mulf %126, %130 : vector<8x128xf32>
    %c40 = arith.constant 40 : index
    %c0_51 = arith.constant 0 : index
    %132 = vector.load %arg6[%c40, %c0_51] : memref<64x512xf32, #tpu.memory_space<vmem>>, vector<8x512xf32>
    %cst_52 = arith.constant dense<0.000000e+00> : vector<8x512xf32>
    %133 = tpu.matmul %131, %0, %cst_52 {dimension_numbers = #tpu.dot_dimension_numbers<[1], [0], [0], [1], [0, 0, 1, 1], [], []>} : vector<8x128xf32>, vector<128x512xf32>, vector<8x512xf32> -> vector<8x512xf32>
    %134 = arith.addf %132, %133 : vector<8x512xf32>
    %135 = math.tanh %134 : vector<8x512xf32>
    %136 = vector.extract_strided_slice %135 {offsets = [0, 0], sizes = [8, 128], strides = [1, 1]} : vector<8x512xf32> to vector<8x128xf32>
    %cst_53 = arith.constant 1.000000e+00 : f32
    %137 = vector.broadcast %cst_53 : f32 to vector<8x128xf32>
    %138 = arith.addf %137, %136 : vector<8x128xf32>
    %cst_54 = arith.constant 5.000000e-01 : f32
    %139 = vector.broadcast %cst_54 : f32 to vector<8x128xf32>
    %140 = arith.mulf %139, %138 : vector<8x128xf32>
    %141 = vector.extract_strided_slice %135 {offsets = [0, 128], sizes = [8, 128], strides = [1, 1]} : vector<8x512xf32> to vector<8x128xf32>
    %cst_55 = arith.constant 1.000000e+00 : f32
    %142 = vector.broadcast %cst_55 : f32 to vector<8x128xf32>
    %143 = arith.addf %142, %141 : vector<8x128xf32>
    %cst_56 = arith.constant 5.000000e-01 : f32
    %144 = vector.broadcast %cst_56 : f32 to vector<8x128xf32>
    %145 = arith.mulf %144, %143 : vector<8x128xf32>
    %146 = vector.extract_strided_slice %135 {offsets = [0, 256], sizes = [8, 128], strides = [1, 1]} : vector<8x512xf32> to vector<8x128xf32>
    %147 = vector.extract_strided_slice %135 {offsets = [0, 384], sizes = [8, 128], strides = [1, 1]} : vector<8x512xf32> to vector<8x128xf32>
    %cst_57 = arith.constant 1.000000e+00 : f32
    %148 = vector.broadcast %cst_57 : f32 to vector<8x128xf32>
    %149 = arith.addf %148, %147 : vector<8x128xf32>
    %cst_58 = arith.constant 5.000000e-01 : f32
    %150 = vector.broadcast %cst_58 : f32 to vector<8x128xf32>
    %151 = arith.mulf %150, %149 : vector<8x128xf32>
    %152 = arith.mulf %145, %129 : vector<8x128xf32>
    %153 = arith.mulf %140, %146 : vector<8x128xf32>
    %154 = arith.addf %152, %153 : vector<8x128xf32>
    %155 = math.tanh %154 : vector<8x128xf32>
    %156 = arith.mulf %151, %155 : vector<8x128xf32>
    %c48 = arith.constant 48 : index
    %c0_59 = arith.constant 0 : index
    %157 = vector.load %arg6[%c48, %c0_59] : memref<64x512xf32, #tpu.memory_space<vmem>>, vector<8x512xf32>
    %cst_60 = arith.constant dense<0.000000e+00> : vector<8x512xf32>
    %158 = tpu.matmul %156, %0, %cst_60 {dimension_numbers = #tpu.dot_dimension_numbers<[1], [0], [0], [1], [0, 0, 1, 1], [], []>} : vector<8x128xf32>, vector<128x512xf32>, vector<8x512xf32> -> vector<8x512xf32>
    %159 = arith.addf %157, %158 : vector<8x512xf32>
    %160 = math.tanh %159 : vector<8x512xf32>
    %161 = vector.extract_strided_slice %160 {offsets = [0, 0], sizes = [8, 128], strides = [1, 1]} : vector<8x512xf32> to vector<8x128xf32>
    %cst_61 = arith.constant 1.000000e+00 : f32
    %162 = vector.broadcast %cst_61 : f32 to vector<8x128xf32>
    %163 = arith.addf %162, %161 : vector<8x128xf32>
    %cst_62 = arith.constant 5.000000e-01 : f32
    %164 = vector.broadcast %cst_62 : f32 to vector<8x128xf32>
    %165 = arith.mulf %164, %163 : vector<8x128xf32>
    %166 = vector.extract_strided_slice %160 {offsets = [0, 128], sizes = [8, 128], strides = [1, 1]} : vector<8x512xf32> to vector<8x128xf32>
    %cst_63 = arith.constant 1.000000e+00 : f32
    %167 = vector.broadcast %cst_63 : f32 to vector<8x128xf32>
    %168 = arith.addf %167, %166 : vector<8x128xf32>
    %cst_64 = arith.constant 5.000000e-01 : f32
    %169 = vector.broadcast %cst_64 : f32 to vector<8x128xf32>
    %170 = arith.mulf %169, %168 : vector<8x128xf32>
    %171 = vector.extract_strided_slice %160 {offsets = [0, 256], sizes = [8, 128], strides = [1, 1]} : vector<8x512xf32> to vector<8x128xf32>
    %172 = vector.extract_strided_slice %160 {offsets = [0, 384], sizes = [8, 128], strides = [1, 1]} : vector<8x512xf32> to vector<8x128xf32>
    %cst_65 = arith.constant 1.000000e+00 : f32
    %173 = vector.broadcast %cst_65 : f32 to vector<8x128xf32>
    %174 = arith.addf %173, %172 : vector<8x128xf32>
    %cst_66 = arith.constant 5.000000e-01 : f32
    %175 = vector.broadcast %cst_66 : f32 to vector<8x128xf32>
    %176 = arith.mulf %175, %174 : vector<8x128xf32>
    %177 = arith.mulf %170, %154 : vector<8x128xf32>
    %178 = arith.mulf %165, %171 : vector<8x128xf32>
    %179 = arith.addf %177, %178 : vector<8x128xf32>
    %180 = math.tanh %179 : vector<8x128xf32>
    %181 = arith.mulf %176, %180 : vector<8x128xf32>
    %c56 = arith.constant 56 : index
    %c0_67 = arith.constant 0 : index
    %182 = vector.load %arg6[%c56, %c0_67] : memref<64x512xf32, #tpu.memory_space<vmem>>, vector<8x512xf32>
    %cst_68 = arith.constant dense<0.000000e+00> : vector<8x512xf32>
    %183 = tpu.matmul %181, %0, %cst_68 {dimension_numbers = #tpu.dot_dimension_numbers<[1], [0], [0], [1], [0, 0, 1, 1], [], []>} : vector<8x128xf32>, vector<128x512xf32>, vector<8x512xf32> -> vector<8x512xf32>
    %184 = arith.addf %182, %183 : vector<8x512xf32>
    %185 = math.tanh %184 : vector<8x512xf32>
    %186 = vector.extract_strided_slice %185 {offsets = [0, 0], sizes = [8, 128], strides = [1, 1]} : vector<8x512xf32> to vector<8x128xf32>
    %cst_69 = arith.constant 1.000000e+00 : f32
    %187 = vector.broadcast %cst_69 : f32 to vector<8x128xf32>
    %188 = arith.addf %187, %186 : vector<8x128xf32>
    %cst_70 = arith.constant 5.000000e-01 : f32
    %189 = vector.broadcast %cst_70 : f32 to vector<8x128xf32>
    %190 = arith.mulf %189, %188 : vector<8x128xf32>
    %191 = vector.extract_strided_slice %185 {offsets = [0, 128], sizes = [8, 128], strides = [1, 1]} : vector<8x512xf32> to vector<8x128xf32>
    %cst_71 = arith.constant 1.000000e+00 : f32
    %192 = vector.broadcast %cst_71 : f32 to vector<8x128xf32>
    %193 = arith.addf %192, %191 : vector<8x128xf32>
    %cst_72 = arith.constant 5.000000e-01 : f32
    %194 = vector.broadcast %cst_72 : f32 to vector<8x128xf32>
    %195 = arith.mulf %194, %193 : vector<8x128xf32>
    %196 = vector.extract_strided_slice %185 {offsets = [0, 256], sizes = [8, 128], strides = [1, 1]} : vector<8x512xf32> to vector<8x128xf32>
    %197 = arith.mulf %195, %179 : vector<8x128xf32>
    %198 = arith.mulf %190, %196 : vector<8x128xf32>
    %199 = arith.addf %197, %198 : vector<8x128xf32>
    %c0_73 = arith.constant 0 : index
    %c0_74 = arith.constant 0 : index
    %200 = vector.load %arg5[%c0_73, %c0_74] : memref<8x128xf32, #tpu.memory_space<vmem>>, vector<8x128xf32>
    tpu.vector_store %arg5[%c0_73, %c0_74], %199 {strides = array<i32>} : memref<8x128xf32, #tpu.memory_space<vmem>>, vector<8x128xf32>,
    return
  }
}

</mosaic_0001>

<llo_original>
// kernel: tpu_custom_call.1
$region0: #{tpu_custom_call.1}
  #allocation0 [shape = 'u32[]', space=smem, size = 0x4, offset = 0x4, fixed_abs, tag = 'smem constant byte address 0x4 - core index']
  #allocation1 [shape = 'u32[144,128]{1,0:T(1,128)}', space=vmem, size = 0x12000, scoped, tag = 'internal scratch']
  #allocation2 [shape = 'f32[64,512]{1,0:T(8,128)}', space=vmem, size = 0x20000, scoped, tag = 'scratch operand']
  %s0 = inlined_call_operand.vmem [shape: f32[64,16], index: 0, kind: input, shape index: {}]
  %s1 = inlined_call_operand.vmem [shape: f32[16,512], index: 1, kind: input, shape index: {}]
  %s2 = inlined_call_operand.hbm [shape: f32[128,512], index: 2, kind: input, shape index: {}]
  %s3 = inlined_call_operand.vmem [shape: f32[1,512], index: 3, kind: input, shape index: {}]
  %s4 = inlined_call_operand.vmem [shape: f32[8,128], index: 4, kind: input, shape index: {}]
  %s5 = inlined_call_operand.hbm [shape: f32[8,128], index: 5, kind: output, shape index: {}]
  %s6 = sld [smem:[#allocation0]]
  $region34: #{tpu_custom_call.1} parent=0
    _
  %s8 = ssub.s32 1, %s6
  %s9 = scalar_select 0, %s8, %s6
  $region1: #{tpu_custom_call.1} parent=0
    #allocation3 [shape = 'u8[262144]{0}', space=vmem, size = 0x40000, scoped, tag = 'input window, operand 2, single buffered']
    #allocation4 [shape = 's32[1]{0}', space=sflag, size = 0x4, scoped, tag = 'scoped memory for tpu_custom_call.1']
    #allocation5 [shape = 's32[1]{0}', space=sflag, size = 0x4, scoped, tag = 'scoped memory for tpu_custom_call.1']
    #allocation6 [shape = 'u8[4096]{0}', space=vmem, size = 0x1000, scoped, tag = 'output window, operand 0, single buffered']
    %10 = vsyncpa [#allocation4], 0
    %11 = vsyncpa [#allocation5], 0
    // Predicated region
    $region2: #{tpu_custom_call.1} parent=1 // pred_check
      _
    $region3: #{tpu_custom_call.1} parent=1 // pred_check_branch
      %13 = sbr.rel (0) target = $region5
    $region4: #{tpu_custom_call.1} parent=1 // pred_region
      _
    $region5: #{tpu_custom_call.1} parent=1 // pred_fallthru
      _
    // Predicated region
    $region6: #{tpu_custom_call.1} parent=1 // pred_check
      _
    $region7: #{tpu_custom_call.1} parent=1 // pred_check_branch
      %15 = sbr.rel (0) target = $region9
    $region8: #{tpu_custom_call.1} parent=1 // pred_region
      _
    $region9: #{tpu_custom_call.1} parent=1 // pred_fallthru
      _
    // Predicated region
    $region10: #{tpu_custom_call.1} parent=1 // pred_check
      _
    $region11: #{tpu_custom_call.1} parent=1 // pred_check_branch
      %17 = sbr.rel (0) target = $region13
    $region12: #{tpu_custom_call.1} parent=1 // pred_region
      %s19 = ssub.s32 8192, 8192
      %20 = vsyncadd [#allocation4], %s19
      %s21 = sshll.u32 [#allocation3], 4
      %s22 = int_to_ptr.vmem [resolvable:$true] %s21
      %27 = dma.hbm_to_vmem [thread:$0]  %s2, 8192, %s22, [#allocation4], 512, 512, 32
    $region13: #{tpu_custom_call.1} parent=1 // pred_fallthru
      _
    // Predicated region
    $region14: #{tpu_custom_call.1} parent=1 // pred_check
      _
    $region15: #{tpu_custom_call.1} parent=1 // pred_check_branch
      %29 = sbr.rel (0) target = $region17
    $region16: #{tpu_custom_call.1} parent=1 // pred_region
      _
    $region17: #{tpu_custom_call.1} parent=1 // pred_fallthru
      _
    // Predicated region
    $region18: #{tpu_custom_call.1} parent=1 // pred_check
      _
    $region19: #{tpu_custom_call.1} parent=1 // pred_check_branch
      %31 = sbr.rel (0) target = $region21
    $region20: #{tpu_custom_call.1} parent=1 // pred_region
      _
    $region21: #{tpu_custom_call.1} parent=1 // pred_fallthru
      _
    // Predicated region
    $region22: #{tpu_custom_call.1} parent=1 // pred_check
      _
    $region23: #{tpu_custom_call.1} parent=1 // pred_check_branch
      %33 = sbr.rel (0) target = $region25
    $region24: #{tpu_custom_call.1} parent=1 // pred_region
      %34 = dma.done [#allocation4], 8192
    $region25: #{tpu_custom_call.1} parent=1 // pred_fallthru
      _
    %v35 = vld [vmem:[#allocation3] sm:$0xff]
    %v36 = vld [vmem:[#allocation3 + $0x8] sm:$0xff]
    %v37 = vld [vmem:[#allocation3 + $0x10] sm:$0xff]
    %v38 = vld [vmem:[#allocation3 + $0x18] sm:$0xff]
    %v39 = vld [vmem:[#allocation3 + $0x20] sm:$0xff]
    %v40 = vld [vmem:[#allocation3 + $0x28] sm:$0xff]
    %v41 = vld [vmem:[#allocation3 + $0x30] sm:$0xff]
    %v42 = vld [vmem:[#allocation3 + $0x38] sm:$0xff]
    %v43 = vld [vmem:[#allocation3 + $0x40] sm:$0xff]
    %v44 = vld [vmem:[#allocation3 + $0x48] sm:$0xff]
    %v45 = vld [vmem:[#allocation3 + $0x50] sm:$0xff]
    %v46 = vld [vmem:[#allocation3 + $0x58] sm:$0xff]
    %v47 = vld [vmem:[#allocation3 + $0x60] sm:$0xff]
    %v48 = vld [vmem:[#allocation3 + $0x68] sm:$0xff]
    %v49 = vld [vmem:[#allocation3 + $0x70] sm:$0xff]
    %v50 = vld [vmem:[#allocation3 + $0x78] sm:$0xff]
    %v51 = vld [vmem:[#allocation3 + $0x80] sm:$0xff]
    %v52 = vld [vmem:[#allocation3 + $0x88] sm:$0xff]
    %v53 = vld [vmem:[#allocation3 + $0x90] sm:$0xff]
    %v54 = vld [vmem:[#allocation3 + $0x98] sm:$0xff]
    %v55 = vld [vmem:[#allocation3 + $0xa0] sm:$0xff]
    %v56 = vld [vmem:[#allocation3 + $0xa8] sm:$0xff]
    %v57 = vld [vmem:[#allocation3 + $0xb0] sm:$0xff]
    %v58 = vld [vmem:[#allocation3 + $0xb8] sm:$0xff]
    %v59 = vld [vmem:[#allocation3 + $0xc0] sm:$0xff]
    %v60 = vld [vmem:[#allocation3 + $0xc8] sm:$0xff]
    %v61 = vld [vmem:[#allocation3 + $0xd0] sm:$0xff]
    %v62 = vld [vmem:[#allocation3 + $0xd8] sm:$0xff]
    %v63 = vld [vmem:[#allocation3 + $0xe0] sm:$0xff]
    %v64 = vld [vmem:[#allocation3 + $0xe8] sm:$0xff]
    %v65 = vld [vmem:[#allocation3 + $0xf0] sm:$0xff]
    %v66 = vld [vmem:[#allocation3 + $0xf8] sm:$0xff]
    %v67 = vld [vmem:[#allocation3 + $0x100] sm:$0xff]
    %v68 = vld [vmem:[#allocation3 + $0x108] sm:$0xff]
    %v69 = vld [vmem:[#allocation3 + $0x110] sm:$0xff]
    %v70 = vld [vmem:[#allocation3 + $0x118] sm:$0xff]
    %v71 = vld [vmem:[#allocation3 + $0x120] sm:$0xff]
    %v72 = vld [vmem:[#allocation3 + $0x128] sm:$0xff]
    %v73 = vld [vmem:[#allocation3 + $0x130] sm:$0xff]
    %v74 = vld [vmem:[#allocation3 + $0x138] sm:$0xff]
    %v75 = vld [vmem:[#allocation3 + $0x140] sm:$0xff]
    %v76 = vld [vmem:[#allocation3 + $0x148] sm:$0xff]
    %v77 = vld [vmem:[#allocation3 + $0x150] sm:$0xff]
    %v78 = vld [vmem:[#allocation3 + $0x158] sm:$0xff]
    %v79 = vld [vmem:[#allocation3 + $0x160] sm:$0xff]
    %v80 = vld [vmem:[#allocation3 + $0x168] sm:$0xff]
    %v81 = vld [vmem:[#allocation3 + $0x170] sm:$0xff]
    %v82 = vld [vmem:[#allocation3 + $0x178] sm:$0xff]
    %v83 = vld [vmem:[#allocation3 + $0x180] sm:$0xff]
    %v84 = vld [vmem:[#allocation3 + $0x188] sm:$0xff]
    %v85 = vld [vmem:[#allocation3 + $0x190] sm:$0xff]
    %v86 = vld [vmem:[#allocation3 + $0x198] sm:$0xff]
    %v87 = vld [vmem:[#allocation3 + $0x1a0] sm:$0xff]
    %v88 = vld [vmem:[#allocation3 + $0x1a8] sm:$0xff]
    %v89 = vld [vmem:[#allocation3 + $0x1b0] sm:$0xff]
    %v90 = vld [vmem:[#allocation3 + $0x1b8] sm:$0xff]
    %v91 = vld [vmem:[#allocation3 + $0x1c0] sm:$0xff]
    %v92 = vld [vmem:[#allocation3 + $0x1c8] sm:$0xff]
    %v93 = vld [vmem:[#allocation3 + $0x1d0] sm:$0xff]
    %v94 = vld [vmem:[#allocation3 + $0x1d8] sm:$0xff]
    %v95 = vld [vmem:[#allocation3 + $0x1e0] sm:$0xff]
    %v96 = vld [vmem:[#allocation3 + $0x1e8] sm:$0xff]
    %v97 = vld [vmem:[#allocation3 + $0x1f0] sm:$0xff]
    %v98 = vld [vmem:[#allocation3 + $0x1f8] sm:$0xff]
    %v99 = vld [vmem:[%s0] sm:$0xff]
    %v100 = vld [vmem:[%s0 + $0x8] sm:$0xff]
    %v101 = vld [vmem:[%s0 + $0x10] sm:$0xff]
    %v102 = vld [vmem:[%s0 + $0x18] sm:$0xff]
    %v103 = vld [vmem:[%s0 + $0x20] sm:$0xff]
    %v104 = vld [vmem:[%s0 + $0x28] sm:$0xff]
    %v105 = vld [vmem:[%s0 + $0x30] sm:$0xff]
    %v106 = vld [vmem:[%s0 + $0x38] sm:$0xff]
    %v107 = vld [vmem:[%s1] sm:$0xff]
    %v108 = vld [vmem:[%s1 + $0x8] sm:$0xff]
    %v109 = vld [vmem:[%s1 + $0x10] sm:$0xff]
    %v110 = vld [vmem:[%s1 + $0x18] sm:$0xff]
    %v111 = vld [vmem:[%s1 + $0x20] sm:$0xff]
    %v112 = vld [vmem:[%s1 + $0x28] sm:$0xff]
    %v113 = vld [vmem:[%s1 + $0x30] sm:$0xff]
    %v114 = vld [vmem:[%s1 + $0x38] sm:$0xff]
    %v115 = vld [vmem:[%s3] sm:$0xf]
    %v117 = vlaneseq
    %v118 = vshrl.u32 %v117, 7
    %v119 = vsub.s32 0, %v118
    %v120 = vrot.slane %v115, %v119
    %v121 = vlaneseq
    %v122 = vshrl.u32 %v121, 7
    %v123 = vsub.s32 1, %v122
    %v124 = vrot.slane %v115, %v123
    %v125 = vlaneseq
    %v126 = vshrl.u32 %v125, 7
    %v127 = vsub.s32 2, %v126
    %v128 = vrot.slane %v115, %v127
    %v129 = vlaneseq
    %v130 = vshrl.u32 %v129, 7
    %v131 = vsub.s32 3, %v130
    %v132 = vrot.slane %v115, %v131
    %vm137 = vcmask 130048
    %v139 = vsel %vm137, %v99, 0
    %v142 = vsel %vm137, %v100, 0
    %v145 = vsel %vm137, %v101, 0
    %v148 = vsel %vm137, %v102, 0
    %v151 = vsel %vm137, %v103, 0
    %v154 = vsel %vm137, %v104, 0
    %v157 = vsel %vm137, %v105, 0
    %v160 = vsel %vm137, %v106, 0
    %162 = vmatprep.subr.mxu0 0.0
    %163 = vmatpush1.msra.mxu0 0.0
    %164 = vmatprep.subr.mxu0 0.0
    %165 = vmatpush1.msra.mxu0 0.0
    %166 = vmatprep.subr.mxu0 0.0
    %167 = vmatpush1.msra.mxu0 0.0
    %168 = vmatprep.subr.mxu0 0.0
    %169 = vmatpush1.msra.mxu0 0.0
    %170 = vmatprep.subr.mxu0 0.0
    %171 = vmatpush1.msra.mxu0 0.0
    %172 = vmatprep.subr.mxu0 0.0
    %173 = vmatpush1.msra.mxu0 0.0
    %174 = vmatprep.subr.mxu0 0.0
    %175 = vmatpush1.msra.mxu0 0.0
    %176 = vmatprep.subr.mxu0 0.0
    %177 = vmatpush1.msra.mxu0 0.0
    %178 = vmatprep.subr.mxu0 0.0
    %179 = vmatpush1.msra.mxu0 0.0
    %180 = vmatprep.subr.mxu0 0.0
    %181 = vmatpush1.msra.mxu0 0.0
    %182 = vmatprep.subr.mxu0 0.0
    %183 = vmatpush1.msra.mxu0 0.0
    %184 = vmatprep.subr.mxu0 0.0
    %185 = vmatpush1.msra.mxu0 0.0
    %186 = vmatprep.subr.mxu0 0.0
    %187 = vmatpush1.msra.mxu0 0.0
    %188 = vmatprep.subr.mxu0 0.0
    %189 = vmatpush1.msra.mxu0 0.0
    %190 = vmatprep.subr.mxu0 %v112
    %191 = vmatpush1.msra.mxu0 %v111
    %192 = vmatprep.subr.mxu0 %v108
    %193 = vmatpush1.msra.mxu0 %v107
    %194 = vmatprep.subr.mxu0 0.0
    %195 = vmatpush2.msra.mxu0 0.0
    %196 = vmatprep.subr.mxu0 0.0
    %197 = vmatpush2.msra.mxu0 0.0
    %198 = vmatprep.subr.mxu0 0.0
    %199 = vmatpush2.msra.mxu0 0.0
    %200 = vmatprep.subr.mxu0 0.0
    %201 = vmatpush2.msra.mxu0 0.0
    %202 = vmatprep.subr.mxu0 0.0
    %203 = vmatpush2.msra.mxu0 0.0
    %204 = vmatprep.subr.mxu0 0.0
    %205 = vmatpush2.msra.mxu0 0.0
    %206 = vmatprep.subr.mxu0 0.0
    %207 = vmatpush2.msra.mxu0 0.0
    %208 = vmatprep.subr.mxu0 0.0
    %209 = vmatpush2.msra.mxu0 0.0
    %210 = vmatprep.subr.mxu0 0.0
    %211 = vmatpush2.msra.mxu0 0.0
    %212 = vmatprep.subr.mxu0 0.0
    %213 = vmatpush2.msra.mxu0 0.0
    %214 = vmatprep.subr.mxu0 0.0
    %215 = vmatpush2.msra.mxu0 0.0
    %216 = vmatprep.subr.mxu0 0.0
    %217 = vmatpush2.msra.mxu0 0.0
    %218 = vmatprep.subr.mxu0 0.0
    %219 = vmatpush2.msra.mxu0 0.0
    %220 = vmatprep.subr.mxu0 0.0
    %221 = vmatpush2.msra.mxu0 0.0
    %222 = vmatprep.subr.mxu0 0.0
    %223 = vmatpush2.msra.mxu0 0.0
    %224 = vmatprep.subr.mxu0 0.0
    %225 = vmatpush2.msra.mxu0 0.0
    %226 = vmatprep.mubr.f32.mxu0 0.0
    %227 = vmatmul.mubr.f32.gmra.mxu0 %v139
    %v228 = vpop.f32.mrf.mxu0
    %v229 = vadd.f32 %v120, %v228
    %v230 = vpop.f32.mrf.mxu0
    %v231 = vadd.f32 %v124, %v230
    %232 = vmatprep.mubr.f32.mxu0 0.0
    %233 = vmatmul.mubr.f32.gmra.mxu0 %v142
    %v234 = vpop.f32.mrf.mxu0
    %v235 = vadd.f32 %v120, %v234
    %v236 = vpop.f32.mrf.mxu0
    %v237 = vadd.f32 %v124, %v236
    %238 = vmatprep.mubr.f32.mxu0 0.0
    %239 = vmatmul.mubr.f32.gmra.mxu0 %v145
    %v240 = vpop.f32.mrf.mxu0
    %v241 = vadd.f32 %v120, %v240
    %v242 = vpop.f32.mrf.mxu0
    %v243 = vadd.f32 %v124, %v242
    %244 = vmatprep.mubr.f32.mxu0 0.0
    %245 = vmatmul.mubr.f32.gmra.mxu0 %v148
    %v246 = vpop.f32.mrf.mxu0
    %v247 = vadd.f32 %v120, %v246
    %v248 = vpop.f32.mrf.mxu0
    %v249 = vadd.f32 %v124, %v248
    %250 = vmatprep.mubr.f32.mxu0 0.0
    %251 = vmatmul.mubr.f32.gmra.mxu0 %v151
    %v252 = vpop.f32.mrf.mxu0
    %v253 = vadd.f32 %v120, %v252
    %v254 = vpop.f32.mrf.mxu0
    %v255 = vadd.f32 %v124, %v254
    %256 = vmatprep.mubr.f32.mxu0 0.0
    %257 = vmatmul.mubr.f32.gmra.mxu0 %v154
    %v258 = vpop.f32.mrf.mxu0
    %v259 = vadd.f32 %v120, %v258
    %v260 = vpop.f32.mrf.mxu0
    %v261 = vadd.f32 %v124, %v260
    %262 = vmatprep.mubr.f32.mxu0 0.0
    %263 = vmatmul.mubr.f32.gmra.mxu0 %v157
    %v264 = vpop.f32.mrf.mxu0
    %v265 = vadd.f32 %v120, %v264
    %v266 = vpop.f32.mrf.mxu0
    %v267 = vadd.f32 %v124, %v266
    %268 = vmatprep.mubr.f32.mxu0 0.0
    %269 = vmatmul.mubr.f32.gmra.mxu0 %v160
    %v270 = vpop.f32.mrf.mxu0
    %v271 = vadd.f32 %v120, %v270
    %v272 = vpop.f32.mrf.mxu0
    %v273 = vadd.f32 %v124, %v272
    %274 = vdwg.mxu0
    %275 = vmatprep.subr.mxu0 0.0
    %276 = vmatpush1.msra.mxu0 0.0
    %277 = vmatprep.subr.mxu0 0.0
    %278 = vmatpush1.msra.mxu0 0.0
    %279 = vmatprep.subr.mxu0 0.0
    %280 = vmatpush1.msra.mxu0 0.0
    %281 = vmatprep.subr.mxu0 0.0
    %282 = vmatpush1.msra.mxu0 0.0
    %283 = vmatprep.subr.mxu0 0.0
    %284 = vmatpush1.msra.mxu0 0.0
    %285 = vmatprep.subr.mxu0 0.0
    %286 = vmatpush1.msra.mxu0 0.0
    %287 = vmatprep.subr.mxu0 0.0
    %288 = vmatpush1.msra.mxu0 0.0
    %289 = vmatprep.subr.mxu0 0.0
    %290 = vmatpush1.msra.mxu0 0.0
    %291 = vmatprep.subr.mxu0 0.0
    %292 = vmatpush1.msra.mxu0 0.0
    %293 = vmatprep.subr.mxu0 0.0
    %294 = vmatpush1.msra.mxu0 0.0
    %295 = vmatprep.subr.mxu0 0.0
    %296 = vmatpush1.msra.mxu0 0.0
    %297 = vmatprep.subr.mxu0 0.0
    %298 = vmatpush1.msra.mxu0 0.0
    %299 = vmatprep.subr.mxu0 0.0
    %300 = vmatpush1.msra.mxu0 0.0
    %301 = vmatprep.subr.mxu0 0.0
    %302 = vmatpush1.msra.mxu0 0.0
    %303 = vmatprep.subr.mxu0 %v114
    %304 = vmatpush1.msra.mxu0 %v113
    %305 = vmatprep.subr.mxu0 %v110
    %306 = vmatpush1.msra.mxu0 %v109
    %307 = vmatprep.subr.mxu0 0.0
    %308 = vmatpush2.msra.mxu0 0.0
    %309 = vmatprep.subr.mxu0 0.0
    %310 = vmatpush2.msra.mxu0 0.0
    %311 = vmatprep.subr.mxu0 0.0
    %312 = vmatpush2.msra.mxu0 0.0
    %313 = vmatprep.subr.mxu0 0.0
    %314 = vmatpush2.msra.mxu0 0.0
    %315 = vmatprep.subr.mxu0 0.0
    %316 = vmatpush2.msra.mxu0 0.0
    %317 = vmatprep.subr.mxu0 0.0
    %318 = vmatpush2.msra.mxu0 0.0
    %319 = vmatprep.subr.mxu0 0.0
    %320 = vmatpush2.msra.mxu0 0.0
    %321 = vmatprep.subr.mxu0 0.0
    %322 = vmatpush2.msra.mxu0 0.0
    %323 = vmatprep.subr.mxu0 0.0
    %324 = vmatpush2.msra.mxu0 0.0
    %325 = vmatprep.subr.mxu0 0.0
    %326 = vmatpush2.msra.mxu0 0.0
    %327 = vmatprep.subr.mxu0 0.0
    %328 = vmatpush2.msra.mxu0 0.0
    %329 = vmatprep.subr.mxu0 0.0
    %330 = vmatpush2.msra.mxu0 0.0
    %331 = vmatprep.subr.mxu0 0.0
    %332 = vmatpush2.msra.mxu0 0.0
    %333 = vmatprep.subr.mxu0 0.0
    %334 = vmatpush2.msra.mxu0 0.0
    %335 = vmatprep.subr.mxu0 0.0
    %336 = vmatpush2.msra.mxu0 0.0
    %337 = vmatprep.subr.mxu0 0.0
    %338 = vmatpush2.msra.mxu0 0.0
    %339 = vmatprep.mubr.f32.mxu0 0.0
    %340 = vmatmul.mubr.f32.gmra.mxu0 %v139
    %v341 = vpop.f32.mrf.mxu0
    %v342 = vadd.f32 %v128, %v341
    %v343 = vpop.f32.mrf.mxu0
    %v344 = vadd.f32 %v132, %v343
    %345 = vmatprep.mubr.f32.mxu0 0.0
    %346 = vmatmul.mubr.f32.gmra.mxu0 %v142
    %v347 = vpop.f32.mrf.mxu0
    %v348 = vadd.f32 %v128, %v347
    %v349 = vpop.f32.mrf.mxu0
    %v350 = vadd.f32 %v132, %v349
    %351 = vmatprep.mubr.f32.mxu0 0.0
    %352 = vmatmul.mubr.f32.gmra.mxu0 %v145
    %v353 = vpop.f32.mrf.mxu0
    %v354 = vadd.f32 %v128, %v353
    %v355 = vpop.f32.mrf.mxu0
    %v356 = vadd.f32 %v132, %v355
    %357 = vmatprep.mubr.f32.mxu0 0.0
    %358 = vmatmul.mubr.f32.gmra.mxu0 %v148
    %v359 = vpop.f32.mrf.mxu0
    %v360 = vadd.f32 %v128, %v359
    %v361 = vpop.f32.mrf.mxu0
    %v362 = vadd.f32 %v132, %v361
    %363 = vmatprep.mubr.f32.mxu0 0.0
    %364 = vmatmul.mubr.f32.gmra.mxu0 %v151
    %v365 = vpop.f32.mrf.mxu0
    %v366 = vadd.f32 %v128, %v365
    %v367 = vpop.f32.mrf.mxu0
    %v368 = vadd.f32 %v132, %v367
    %369 = vmatprep.mubr.f32.mxu0 0.0
    %370 = vmatmul.mubr.f32.gmra.mxu0 %v154
    %v371 = vpop.f32.mrf.mxu0
    %v372 = vadd.f32 %v128, %v371
    %v373 = vpop.f32.mrf.mxu0
    %v374 = vadd.f32 %v132, %v373
    %375 = vmatprep.mubr.f32.mxu0 0.0
    %376 = vmatmul.mubr.f32.gmra.mxu0 %v157
    %v377 = vpop.f32.mrf.mxu0
    %v378 = vadd.f32 %v128, %v377
    %v379 = vpop.f32.mrf.mxu0
    %v380 = vadd.f32 %v132, %v379
    %381 = vmatprep.mubr.f32.mxu0 0.0
    %382 = vmatmul.mubr.f32.gmra.mxu0 %v160
    %v383 = vpop.f32.mrf.mxu0
    %v384 = vadd.f32 %v128, %v383
    %v385 = vpop.f32.mrf.mxu0
    %v386 = vadd.f32 %v132, %v385
    %387 = vdwg.mxu0
    %388 = vst [vmem:[#allocation2] sm:$0xff] %v229
    %389 = vst [vmem:[#allocation2 + $0x8] sm:$0xff] %v231
    %390 = vst [vmem:[#allocation2 + $0x10] sm:$0xff] %v342
    %391 = vst [vmem:[#allocation2 + $0x18] sm:$0xff] %v344
    %392 = vst [vmem:[#allocation2 + $0x20] sm:$0xff] %v235
    %393 = vst [vmem:[#allocation2 + $0x28] sm:$0xff] %v237
    %394 = vst [vmem:[#allocation2 + $0x30] sm:$0xff] %v348
    %395 = vst [vmem:[#allocation2 + $0x38] sm:$0xff] %v350
    %396 = vst [vmem:[#allocation2 + $0x40] sm:$0xff] %v241
    %397 = vst [vmem:[#allocation2 + $0x48] sm:$0xff] %v243
    %398 = vst [vmem:[#allocation2 + $0x50] sm:$0xff] %v354
    %399 = vst [vmem:[#allocation2 + $0x58] sm:$0xff] %v356
    %400 = vst [vmem:[#allocation2 + $0x60] sm:$0xff] %v247
    %401 = vst [vmem:[#allocation2 + $0x68] sm:$0xff] %v249
    %402 = vst [vmem:[#allocation2 + $0x70] sm:$0xff] %v360
    %403 = vst [vmem:[#allocation2 + $0x78] sm:$0xff] %v362
    %404 = vst [vmem:[#allocation2 + $0x80] sm:$0xff] %v253
    %405 = vst [vmem:[#allocation2 + $0x88] sm:$0xff] %v255
    %406 = vst [vmem:[#allocation2 + $0x90] sm:$0xff] %v366
    %407 = vst [vmem:[#allocation2 + $0x98] sm:$0xff] %v368
    %408 = vst [vmem:[#allocation2 + $0xa0] sm:$0xff] %v259
    %409 = vst [vmem:[#allocation2 + $0xa8] sm:$0xff] %v261
    %410 = vst [vmem:[#allocation2 + $0xb0] sm:$0xff] %v372
    %411 = vst [vmem:[#allocation2 + $0xb8] sm:$0xff] %v374
    %412 = vst [vmem:[#allocation2 + $0xc0] sm:$0xff] %v265
    %413 = vst [vmem:[#allocation2 + $0xc8] sm:$0xff] %v267
    %414 = vst [vmem:[#allocation2 + $0xd0] sm:$0xff] %v378
    %415 = vst [vmem:[#allocation2 + $0xd8] sm:$0xff] %v380
    %416 = vst [vmem:[#allocation2 + $0xe0] sm:$0xff] %v271
    %417 = vst [vmem:[#allocation2 + $0xe8] sm:$0xff] %v273
    %418 = vst [vmem:[#allocation2 + $0xf0] sm:$0xff] %v384
    %419 = vst [vmem:[#allocation2 + $0xf8] sm:$0xff] %v386
    %v420 = vld [vmem:[%s4] sm:$0xff]
    %v421 = vld [vmem:[#allocation2] sm:$0xff]
    %v422 = vld [vmem:[#allocation2 + $0x8] sm:$0xff]
    %v423 = vld [vmem:[#allocation2 + $0x10] sm:$0xff]
    %v424 = vld [vmem:[#allocation2 + $0x18] sm:$0xff]
    %v425 = vtanh.pop %v421
    %v426 = vtanh.pop %v422
    %v427 = vtanh.pop %v423
    %v428 = vtanh.pop %v424
    %v429 = vadd.f32 %v425, 1.0
    %v430 = vmul.f32 %v429, 0.5
    %v431 = vadd.f32 %v426, 1.0
    %v432 = vmul.f32 %v431, 0.5
    %v433 = vadd.f32 %v428, 1.0
    %v434 = vmul.f32 %v433, 0.5
    %v435 = vmul.f32 %v432, %v420
    %v436 = vmul.f32 %v430, %v427
    %v437 = vadd.f32 %v435, %v436
    %v438 = vtanh.pop %v437
    %v439 = vmul.f32 %v434, %v438
    %v440 = vld [vmem:[#allocation2 + $0x20] sm:$0xff]
    %v441 = vld [vmem:[#allocation2 + $0x28] sm:$0xff]
    %v442 = vld [vmem:[#allocation2 + $0x30] sm:$0xff]
    %v443 = vld [vmem:[#allocation2 + $0x38] sm:$0xff]
    %444 = vmatprep.subr.mxu0 %v96
    %445 = vmatpush1.msra.mxu0 %v95
    %446 = vmatprep.subr.mxu0 %v92
    %447 = vmatpush1.msra.mxu0 %v91
    %448 = vmatprep.subr.mxu0 %v88
    %449 = vmatpush1.msra.mxu0 %v87
    %450 = vmatprep.subr.mxu0 %v84
    %451 = vmatpush1.msra.mxu0 %v83
    %452 = vmatprep.subr.mxu0 %v80
    %453 = vmatpush1.msra.mxu0 %v79
    %454 = vmatprep.subr.mxu0 %v76
    %455 = vmatpush1.msra.mxu0 %v75
    %456 = vmatprep.subr.mxu0 %v72
    %457 = vmatpush1.msra.mxu0 %v71
    %458 = vmatprep.subr.mxu0 %v68
    %459 = vmatpush1.msra.mxu0 %v67
    %460 = vmatprep.subr.mxu0 %v64
    %461 = vmatpush1.msra.mxu0 %v63
    %462 = vmatprep.subr.mxu0 %v60
    %463 = vmatpush1.msra.mxu0 %v59
    %464 = vmatprep.subr.mxu0 %v56
    %465 = vmatpush1.msra.mxu0 %v55
    %466 = vmatprep.subr.mxu0 %v52
    %467 = vmatpush1.msra.mxu0 %v51
    %468 = vmatprep.subr.mxu0 %v48
    %469 = vmatpush1.msra.mxu0 %v47
    %470 = vmatprep.subr.mxu0 %v44
    %471 = vmatpush1.msra.mxu0 %v43
    %472 = vmatprep.subr.mxu0 %v40
    %473 = vmatpush1.msra.mxu0 %v39
    %474 = vmatprep.subr.mxu0 %v36
    %475 = vmatpush1.msra.mxu0 %v35
    %476 = vmatprep.subr.mxu0 0.0
    %477 = vmatpush2.msra.mxu0 0.0
    %478 = vmatprep.subr.mxu0 0.0
    %479 = vmatpush2.msra.mxu0 0.0
    %480 = vmatprep.subr.mxu0 0.0
    %481 = vmatpush2.msra.mxu0 0.0
    %482 = vmatprep.subr.mxu0 0.0
    %483 = vmatpush2.msra.mxu0 0.0
    %484 = vmatprep.subr.mxu0 0.0
    %485 = vmatpush2.msra.mxu0 0.0
    %486 = vmatprep.subr.mxu0 0.0
    %487 = vmatpush2.msra.mxu0 0.0
    %488 = vmatprep.subr.mxu0 0.0
    %489 = vmatpush2.msra.mxu0 0.0
    %490 = vmatprep.subr.mxu0 0.0
    %491 = vmatpush2.msra.mxu0 0.0
    %492 = vmatprep.subr.mxu0 0.0
    %493 = vmatpush2.msra.mxu0 0.0
    %494 = vmatprep.subr.mxu0 0.0
    %495 = vmatpush2.msra.mxu0 0.0
    %496 = vmatprep.subr.mxu0 0.0
    %497 = vmatpush2.msra.mxu0 0.0
    %498 = vmatprep.subr.mxu0 0.0
    %499 = vmatpush2.msra.mxu0 0.0
    %500 = vmatprep.subr.mxu0 0.0
    %501 = vmatpush2.msra.mxu0 0.0
    %502 = vmatprep.subr.mxu0 0.0
    %503 = vmatpush2.msra.mxu0 0.0
    %504 = vmatprep.subr.mxu0 0.0
    %505 = vmatpush2.msra.mxu0 0.0
    %506 = vmatprep.subr.mxu0 0.0
    %507 = vmatpush2.msra.mxu0 0.0
    %508 = vmatprep.mubr.f32.mxu0 0.0
    %509 = vmatmul.mubr.f32.gmra.mxu0 %v439
    %v510 = vpop.f32.mrf.mxu0
    %v511 = vadd.f32 0.0, %v510
    %v512 = vpop.f32.mrf.mxu0
    %v513 = vadd.f32 0.0, %v512
    %514 = vdwg.mxu0
    %515 = vmatprep.subr.mxu0 %v98
    %516 = vmatpush1.msra.mxu0 %v97
    %517 = vmatprep.subr.mxu0 %v94
    %518 = vmatpush1.msra.mxu0 %v93
    %519 = vmatprep.subr.mxu0 %v90
    %520 = vmatpush1.msra.mxu0 %v89
    %521 = vmatprep.subr.mxu0 %v86
    %522 = vmatpush1.msra.mxu0 %v85
    %523 = vmatprep.subr.mxu0 %v82
    %524 = vmatpush1.msra.mxu0 %v81
    %525 = vmatprep.subr.mxu0 %v78
    %526 = vmatpush1.msra.mxu0 %v77
    %527 = vmatprep.subr.mxu0 %v74
    %528 = vmatpush1.msra.mxu0 %v73
    %529 = vmatprep.subr.mxu0 %v70
    %530 = vmatpush1.msra.mxu0 %v69
    %531 = vmatprep.subr.mxu0 %v66
    %532 = vmatpush1.msra.mxu0 %v65
    %533 = vmatprep.subr.mxu0 %v62
    %534 = vmatpush1.msra.mxu0 %v61
    %535 = vmatprep.subr.mxu0 %v58
    %536 = vmatpush1.msra.mxu0 %v57
    %537 = vmatprep.subr.mxu0 %v54
    %538 = vmatpush1.msra.mxu0 %v53
    %539 = vmatprep.subr.mxu0 %v50
    %540 = vmatpush1.msra.mxu0 %v49
    %541 = vmatprep.subr.mxu0 %v46
    %542 = vmatpush1.msra.mxu0 %v45
    %543 = vmatprep.subr.mxu0 %v42
    %544 = vmatpush1.msra.mxu0 %v41
    %545 = vmatprep.subr.mxu0 %v38
    %546 = vmatpush1.msra.mxu0 %v37
    %547 = vmatprep.subr.mxu0 0.0
    %548 = vmatpush2.msra.mxu0 0.0
    %549 = vmatprep.subr.mxu0 0.0
    %550 = vmatpush2.msra.mxu0 0.0
    %551 = vmatprep.subr.mxu0 0.0
    %552 = vmatpush2.msra.mxu0 0.0
    %553 = vmatprep.subr.mxu0 0.0
    %554 = vmatpush2.msra.mxu0 0.0
    %555 = vmatprep.subr.mxu0 0.0
    %556 = vmatpush2.msra.mxu0 0.0
    %557 = vmatprep.subr.mxu0 0.0
    %558 = vmatpush2.msra.mxu0 0.0
    %559 = vmatprep.subr.mxu0 0.0
    %560 = vmatpush2.msra.mxu0 0.0
    %561 = vmatprep.subr.mxu0 0.0
    %562 = vmatpush2.msra.mxu0 0.0
    %563 = vmatprep.subr.mxu0 0.0
    %564 = vmatpush2.msra.mxu0 0.0
    %565 = vmatprep.subr.mxu0 0.0
    %566 = vmatpush2.msra.mxu0 0.0
    %567 = vmatprep.subr.mxu0 0.0
    %568 = vmatpush2.msra.mxu0 0.0
    %569 = vmatprep.subr.mxu0 0.0
    %570 = vmatpush2.msra.mxu0 0.0
    %571 = vmatprep.subr.mxu0 0.0
    %572 = vmatpush2.msra.mxu0 0.0
    %573 = vmatprep.subr.mxu0 0.0
    %574 = vmatpush2.msra.mxu0 0.0
    %575 = vmatprep.subr.mxu0 0.0
    %576 = vmatpush2.msra.mxu0 0.0
    %577 = vmatprep.subr.mxu0 0.0
    %578 = vmatpush2.msra.mxu0 0.0
    %579 = vmatprep.mubr.f32.mxu0 0.0
    %580 = vmatmul.mubr.f32.gmra.mxu0 %v439
    %v581 = vpop.f32.mrf.mxu0
    %v582 = vadd.f32 0.0, %v581
    %v583 = vpop.f32.mrf.mxu0
    %v584 = vadd.f32 0.0, %v583
    %585 = vdwg.mxu0
    %v586 = vadd.f32 %v440, %v511
    %v587 = vadd.f32 %v441, %v513
    %v588 = vadd.f32 %v442, %v582
    %v589 = vadd.f32 %v443, %v584
    %v590 = vtanh.pop %v586
    %v591 = vtanh.pop %v587
    %v592 = vtanh.pop %v588
    %v593 = vtanh.pop %v589
    %v594 = vadd.f32 %v590, 1.0
    %v595 = vmul.f32 %v594, 0.5
    %v596 = vadd.f32 %v591, 1.0
    %v597 = vmul.f32 %v596, 0.5
    %v598 = vadd.f32 %v593, 1.0
    %v599 = vmul.f32 %v598, 0.5
    %v600 = vmul.f32 %v597, %v437
    %v601 = vmul.f32 %v595, %v592
    %v602 = vadd.f32 %v600, %v601
    %v603 = vtanh.pop %v602
    %v604 = vmul.f32 %v599, %v603
    %v605 = vld [vmem:[#allocation2 + $0x40] sm:$0xff]
    %v606 = vld [vmem:[#allocation2 + $0x48] sm:$0xff]
    %v607 = vld [vmem:[#allocation2 + $0x50] sm:$0xff]
    %v608 = vld [vmem:[#allocation2 + $0x58] sm:$0xff]
    %609 = vmatprep.subr.mxu0 %v96
    %610 = vmatpush1.msra.mxu0 %v95
    %611 = vmatprep.subr.mxu0 %v92
    %612 = vmatpush1.msra.mxu0 %v91
    %613 = vmatprep.subr.mxu0 %v88
    %614 = vmatpush1.msra.mxu0 %v87
    %615 = vmatprep.subr.mxu0 %v84
    %616 = vmatpush1.msra.mxu0 %v83
    %617 = vmatprep.subr.mxu0 %v80
    %618 = vmatpush1.msra.mxu0 %v79
    %619 = vmatprep.subr.mxu0 %v76
    %620 = vmatpush1.msra.mxu0 %v75
    %621 = vmatprep.subr.mxu0 %v72
    %622 = vmatpush1.msra.mxu0 %v71
    %623 = vmatprep.subr.mxu0 %v68
    %624 = vmatpush1.msra.mxu0 %v67
    %625 = vmatprep.subr.mxu0 %v64
    %626 = vmatpush1.msra.mxu0 %v63
    %627 = vmatprep.subr.mxu0 %v60
    %628 = vmatpush1.msra.mxu0 %v59
    %629 = vmatprep.subr.mxu0 %v56
    %630 = vmatpush1.msra.mxu0 %v55
    %631 = vmatprep.subr.mxu0 %v52
    %632 = vmatpush1.msra.mxu0 %v51
    %633 = vmatprep.subr.mxu0 %v48
    %634 = vmatpush1.msra.mxu0 %v47
    %635 = vmatprep.subr.mxu0 %v44
    %636 = vmatpush1.msra.mxu0 %v43
    %637 = vmatprep.subr.mxu0 %v40
    %638 = vmatpush1.msra.mxu0 %v39
    %639 = vmatprep.subr.mxu0 %v36
    %640 = vmatpush1.msra.mxu0 %v35
    %641 = vmatprep.subr.mxu0 0.0
    %642 = vmatpush2.msra.mxu0 0.0
    %643 = vmatprep.subr.mxu0 0.0
    %644 = vmatpush2.msra.mxu0 0.0
    %645 = vmatprep.subr.mxu0 0.0
    %646 = vmatpush2.msra.mxu0 0.0
    %647 = vmatprep.subr.mxu0 0.0
    %648 = vmatpush2.msra.mxu0 0.0
    %649 = vmatprep.subr.mxu0 0.0
    %650 = vmatpush2.msra.mxu0 0.0
    %651 = vmatprep.subr.mxu0 0.0
    %652 = vmatpush2.msra.mxu0 0.0
    %653 = vmatprep.subr.mxu0 0.0
    %654 = vmatpush2.msra.mxu0 0.0
    %655 = vmatprep.subr.mxu0 0.0
    %656 = vmatpush2.msra.mxu0 0.0
    %657 = vmatprep.subr.mxu0 0.0
    %658 = vmatpush2.msra.mxu0 0.0
    %659 = vmatprep.subr.mxu0 0.0
    %660 = vmatpush2.msra.mxu0 0.0
    %661 = vmatprep.subr.mxu0 0.0
    %662 = vmatpush2.msra.mxu0 0.0
    %663 = vmatprep.subr.mxu0 0.0
    %664 = vmatpush2.msra.mxu0 0.0
    %665 = vmatprep.subr.mxu0 0.0
    %666 = vmatpush2.msra.mxu0 0.0
    %667 = vmatprep.subr.mxu0 0.0
    %668 = vmatpush2.msra.mxu0 0.0
    %669 = vmatprep.subr.mxu0 0.0
    %670 = vmatpush2.msra.mxu0 0.0
    %671 = vmatprep.subr.mxu0 0.0
    %672 = vmatpush2.msra.mxu0 0.0
    %673 = vmatprep.mubr.f32.mxu0 0.0
    %674 = vmatmul.mubr.f32.gmra.mxu0 %v604
    %v675 = vpop.f32.mrf.mxu0
    %v676 = vadd.f32 0.0, %v675
    %v677 = vpop.f32.mrf.mxu0
    %v678 = vadd.f32 0.0, %v677
    %679 = vdwg.mxu0
    %680 = vmatprep.subr.mxu0 %v98
    %681 = vmatpush1.msra.mxu0 %v97
    %682 = vmatprep.subr.mxu0 %v94
    %683 = vmatpush1.msra.mxu0 %v93
    %684 = vmatprep.subr.mxu0 %v90
    %685 = vmatpush1.msra.mxu0 %v89
    %686 = vmatprep.subr.mxu0 %v86
    %687 = vmatpush1.msra.mxu0 %v85
    %688 = vmatprep.subr.mxu0 %v82
    %689 = vmatpush1.msra.mxu0 %v81
    %690 = vmatprep.subr.mxu0 %v78
    %691 = vmatpush1.msra.mxu0 %v77
    %692 = vmatprep.subr.mxu0 %v74
    %693 = vmatpush1.msra.mxu0 %v73
    %694 = vmatprep.subr.mxu0 %v70
    %695 = vmatpush1.msra.mxu0 %v69
    %696 = vmatprep.subr.mxu0 %v66
    %697 = vmatpush1.msra.mxu0 %v65
    %698 = vmatprep.subr.mxu0 %v62
    %699 = vmatpush1.msra.mxu0 %v61
    %700 = vmatprep.subr.mxu0 %v58
    %701 = vmatpush1.msra.mxu0 %v57
    %702 = vmatprep.subr.mxu0 %v54
    %703 = vmatpush1.msra.mxu0 %v53
    %704 = vmatprep.subr.mxu0 %v50
    %705 = vmatpush1.msra.mxu0 %v49
    %706 = vmatprep.subr.mxu0 %v46
    %707 = vmatpush1.msra.mxu0 %v45
    %708 = vmatprep.subr.mxu0 %v42
    %709 = vmatpush1.msra.mxu0 %v41
    %710 = vmatprep.subr.mxu0 %v38
    %711 = vmatpush1.msra.mxu0 %v37
    %712 = vmatprep.subr.mxu0 0.0
    %713 = vmatpush2.msra.mxu0 0.0
    %714 = vmatprep.subr.mxu0 0.0
    %715 = vmatpush2.msra.mxu0 0.0
    %716 = vmatprep.subr.mxu0 0.0
    %717 = vmatpush2.msra.mxu0 0.0
    %718 = vmatprep.subr.mxu0 0.0
    %719 = vmatpush2.msra.mxu0 0.0
    %720 = vmatprep.subr.mxu0 0.0
    %721 = vmatpush2.msra.mxu0 0.0
    %722 = vmatprep.subr.mxu0 0.0
    %723 = vmatpush2.msra.mxu0 0.0
    %724 = vmatprep.subr.mxu0 0.0
    %725 = vmatpush2.msra.mxu0 0.0
    %726 = vmatprep.subr.mxu0 0.0
    %727 = vmatpush2.msra.mxu0 0.0
    %728 = vmatprep.subr.mxu0 0.0
    %729 = vmatpush2.msra.mxu0 0.0
    %730 = vmatprep.subr.mxu0 0.0
    %731 = vmatpush2.msra.mxu0 0.0
    %732 = vmatprep.subr.mxu0 0.0
    %733 = vmatpush2.msra.mxu0 0.0
    %734 = vmatprep.subr.mxu0 0.0
    %735 = vmatpush2.msra.mxu0 0.0
    %736 = vmatprep.subr.mxu0 0.0
    %737 = vmatpush2.msra.mxu0 0.0
    %738 = vmatprep.subr.mxu0 0.0
    %739 = vmatpush2.msra.mxu0 0.0
    %740 = vmatprep.subr.mxu0 0.0
    %741 = vmatpush2.msra.mxu0 0.0
    %742 = vmatprep.subr.mxu0 0.0
    %743 = vmatpush2.msra.mxu0 0.0
    %744 = vmatprep.mubr.f32.mxu0 0.0
    %745 = vmatmul.mubr.f32.gmra.mxu0 %v604
    %v746 = vpop.f32.mrf.mxu0
    %v747 = vadd.f32 0.0, %v746
    %v748 = vpop.f32.mrf.mxu0
    %v749 = vadd.f32 0.0, %v748
    %750 = vdwg.mxu0
    %v751 = vadd.f32 %v605, %v676
    %v752 = vadd.f32 %v606, %v678
    %v753 = vadd.f32 %v607, %v747
    %v754 = vadd.f32 %v608, %v749
    %v755 = vtanh.pop %v751
    %v756 = vtanh.pop %v752
    %v757 = vtanh.pop %v753
    %v758 = vtanh.pop %v754
    %v759 = vadd.f32 %v755, 1.0
    %v760 = vmul.f32 %v759, 0.5
    %v761 = vadd.f32 %v756, 1.0
    %v762 = vmul.f32 %v761, 0.5
    %v763 = vadd.f32 %v758, 1.0
    %v764 = vmul.f32 %v763, 0.5
    %v765 = vmul.f32 %v762, %v602
    %v766 = vmul.f32 %v760, %v757
    %v767 = vadd.f32 %v765, %v766
    %v768 = vtanh.pop %v767
    %v769 = vmul.f32 %v764, %v768
    %v770 = vld [vmem:[#allocation2 + $0x60] sm:$0xff]
    %v771 = vld [vmem:[#allocation2 + $0x68] sm:$0xff]
    %v772 = vld [vmem:[#allocation2 + $0x70] sm:$0xff]
    %v773 = vld [vmem:[#allocation2 + $0x78] sm:$0xff]
    %774 = vmatprep.subr.mxu0 %v96
    %775 = vmatpush1.msra.mxu0 %v95
    %776 = vmatprep.subr.mxu0 %v92
    %777 = vmatpush1.msra.mxu0 %v91
    %778 = vmatprep.subr.mxu0 %v88
    %779 = vmatpush1.msra.mxu0 %v87
    %780 = vmatprep.subr.mxu0 %v84
    %781 = vmatpush1.msra.mxu0 %v83
    %782 = vmatprep.subr.mxu0 %v80
    %783 = vmatpush1.msra.mxu0 %v79
    %784 = vmatprep.subr.mxu0 %v76
    %785 = vmatpush1.msra.mxu0 %v75
    %786 = vmatprep.subr.mxu0 %v72
    %787 = vmatpush1.msra.mxu0 %v71
    %788 = vmatprep.subr.mxu0 %v68
    %789 = vmatpush1.msra.mxu0 %v67
    %790 = vmatprep.subr.mxu0 %v64
    %791 = vmatpush1.msra.mxu0 %v63
    %792 = vmatprep.subr.mxu0 %v60
    %793 = vmatpush1.msra.mxu0 %v59
    %794 = vmatprep.subr.mxu0 %v56
    %795 = vmatpush1.msra.mxu0 %v55
    %796 = vmatprep.subr.mxu0 %v52
    %797 = vmatpush1.msra.mxu0 %v51
    %798 = vmatprep.subr.mxu0 %v48
    %799 = vmatpush1.msra.mxu0 %v47
    %800 = vmatprep.subr.mxu0 %v44
    %801 = vmatpush1.msra.mxu0 %v43
    %802 = vmatprep.subr.mxu0 %v40
    %803 = vmatpush1.msra.mxu0 %v39
    %804 = vmatprep.subr.mxu0 %v36
    %805 = vmatpush1.msra.mxu0 %v35
    %806 = vmatprep.subr.mxu0 0.0
    %807 = vmatpush2.msra.mxu0 0.0
    %808 = vmatprep.subr.mxu0 0.0
    %809 = vmatpush2.msra.mxu0 0.0
    %810 = vmatprep.subr.mxu0 0.0
    %811 = vmatpush2.msra.mxu0 0.0
    %812 = vmatprep.subr.mxu0 0.0
    %813 = vmatpush2.msra.mxu0 0.0
    %814 = vmatprep.subr.mxu0 0.0
    %815 = vmatpush2.msra.mxu0 0.0
    %816 = vmatprep.subr.mxu0 0.0
    %817 = vmatpush2.msra.mxu0 0.0
    %818 = vmatprep.subr.mxu0 0.0
    %819 = vmatpush2.msra.mxu0 0.0
    %820 = vmatprep.subr.mxu0 0.0
    %821 = vmatpush2.msra.mxu0 0.0
    %822 = vmatprep.subr.mxu0 0.0
    %823 = vmatpush2.msra.mxu0 0.0
    %824 = vmatprep.subr.mxu0 0.0
    %825 = vmatpush2.msra.mxu0 0.0
    %826 = vmatprep.subr.mxu0 0.0
    %827 = vmatpush2.msra.mxu0 0.0
    %828 = vmatprep.subr.mxu0 0.0
    %829 = vmatpush2.msra.mxu0 0.0
    %830 = vmatprep.subr.mxu0 0.0
    %831 = vmatpush2.msra.mxu0 0.0
    %832 = vmatprep.subr.mxu0 0.0
    %833 = vmatpush2.msra.mxu0 0.0
    %834 = vmatprep.subr.mxu0 0.0
    %835 = vmatpush2.msra.mxu0 0.0
    %836 = vmatprep.subr.mxu0 0.0
    %837 = vmatpush2.msra.mxu0 0.0
    %838 = vmatprep.mubr.f32.mxu0 0.0
    %839 = vmatmul.mubr.f32.gmra.mxu0 %v769
    %v840 = vpop.f32.mrf.mxu0
    %v841 = vadd.f32 0.0, %v840
    %v842 = vpop.f32.mrf.mxu0
    %v843 = vadd.f32 0.0, %v842
    %844 = vdwg.mxu0
    %845 = vmatprep.subr.mxu0 %v98
    %846 = vmatpush1.msra.mxu0 %v97
    %847 = vmatprep.subr.mxu0 %v94
    %848 = vmatpush1.msra.mxu0 %v93
    %849 = vmatprep.subr.mxu0 %v90
    %850 = vmatpush1.msra.mxu0 %v89
    %851 = vmatprep.subr.mxu0 %v86
    %852 = vmatpush1.msra.mxu0 %v85
    %853 = vmatprep.subr.mxu0 %v82
    %854 = vmatpush1.msra.mxu0 %v81
    %855 = vmatprep.subr.mxu0 %v78
    %856 = vmatpush1.msra.mxu0 %v77
    %857 = vmatprep.subr.mxu0 %v74
    %858 = vmatpush1.msra.mxu0 %v73
    %859 = vmatprep.subr.mxu0 %v70
    %860 = vmatpush1.msra.mxu0 %v69
    %861 = vmatprep.subr.mxu0 %v66
    %862 = vmatpush1.msra.mxu0 %v65
    %863 = vmatprep.subr.mxu0 %v62
    %864 = vmatpush1.msra.mxu0 %v61
    %865 = vmatprep.subr.mxu0 %v58
    %866 = vmatpush1.msra.mxu0 %v57
    %867 = vmatprep.subr.mxu0 %v54
    %868 = vmatpush1.msra.mxu0 %v53
    %869 = vmatprep.subr.mxu0 %v50
    %870 = vmatpush1.msra.mxu0 %v49
    %871 = vmatprep.subr.mxu0 %v46
    %872 = vmatpush1.msra.mxu0 %v45
    %873 = vmatprep.subr.mxu0 %v42
    %874 = vmatpush1.msra.mxu0 %v41
    %875 = vmatprep.subr.mxu0 %v38
    %876 = vmatpush1.msra.mxu0 %v37
    %877 = vmatprep.subr.mxu0 0.0
    %878 = vmatpush2.msra.mxu0 0.0
    %879 = vmatprep.subr.mxu0 0.0
    %880 = vmatpush2.msra.mxu0 0.0
    %881 = vmatprep.subr.mxu0 0.0
    %882 = vmatpush2.msra.mxu0 0.0
    %883 = vmatprep.subr.mxu0 0.0
    %884 = vmatpush2.msra.mxu0 0.0
    %885 = vmatprep.subr.mxu0 0.0
    %886 = vmatpush2.msra.mxu0 0.0
    %887 = vmatprep.subr.mxu0 0.0
    %888 = vmatpush2.msra.mxu0 0.0
    %889 = vmatprep.subr.mxu0 0.0
    %890 = vmatpush2.msra.mxu0 0.0
    %891 = vmatprep.subr.mxu0 0.0
    %892 = vmatpush2.msra.mxu0 0.0
    %893 = vmatprep.subr.mxu0 0.0
    %894 = vmatpush2.msra.mxu0 0.0
    %895 = vmatprep.subr.mxu0 0.0
    %896 = vmatpush2.msra.mxu0 0.0
    %897 = vmatprep.subr.mxu0 0.0
    %898 = vmatpush2.msra.mxu0 0.0
    %899 = vmatprep.subr.mxu0 0.0
    %900 = vmatpush2.msra.mxu0 0.0
    %901 = vmatprep.subr.mxu0 0.0
    %902 = vmatpush2.msra.mxu0 0.0
    %903 = vmatprep.subr.mxu0 0.0
    %904 = vmatpush2.msra.mxu0 0.0
    %905 = vmatprep.subr.mxu0 0.0
    %906 = vmatpush2.msra.mxu0 0.0
    %907 = vmatprep.subr.mxu0 0.0
    %908 = vmatpush2.msra.mxu0 0.0
    %909 = vmatprep.mubr.f32.mxu0 0.0
    %910 = vmatmul.mubr.f32.gmra.mxu0 %v769
    %v911 = vpop.f32.mrf.mxu0
    %v912 = vadd.f32 0.0, %v911
    %v913 = vpop.f32.mrf.mxu0
    %v914 = vadd.f32 0.0, %v913
    %915 = vdwg.mxu0
    %v916 = vadd.f32 %v770, %v841
    %v917 = vadd.f32 %v771, %v843
    %v918 = vadd.f32 %v772, %v912
    %v919 = vadd.f32 %v773, %v914
    %v920 = vtanh.pop %v916
    %v921 = vtanh.pop %v917
    %v922 = vtanh.pop %v918
    %v923 = vtanh.pop %v919
    %v924 = vadd.f32 %v920, 1.0
    %v925 = vmul.f32 %v924, 0.5
    %v926 = vadd.f32 %v921, 1.0
    %v927 = vmul.f32 %v926, 0.5
    %v928 = vadd.f32 %v923, 1.0
    %v929 = vmul.f32 %v928, 0.5
    %v930 = vmul.f32 %v927, %v767
    %v931 = vmul.f32 %v925, %v922
    %v932 = vadd.f32 %v930, %v931
    %v933 = vtanh.pop %v932
    %v934 = vmul.f32 %v929, %v933
    %v935 = vld [vmem:[#allocation2 + $0x80] sm:$0xff]
    %v936 = vld [vmem:[#allocation2 + $0x88] sm:$0xff]
    %v937 = vld [vmem:[#allocation2 + $0x90] sm:$0xff]
    %v938 = vld [vmem:[#allocation2 + $0x98] sm:$0xff]
    %939 = vmatprep.subr.mxu0 %v96
    %940 = vmatpush1.msra.mxu0 %v95
    %941 = vmatprep.subr.mxu0 %v92
    %942 = vmatpush1.msra.mxu0 %v91
    %943 = vmatprep.subr.mxu0 %v88
    %944 = vmatpush1.msra.mxu0 %v87
    %945 = vmatprep.subr.mxu0 %v84
    %946 = vmatpush1.msra.mxu0 %v83
    %947 = vmatprep.subr.mxu0 %v80
    %948 = vmatpush1.msra.mxu0 %v79
    %949 = vmatprep.subr.mxu0 %v76
    %950 = vmatpush1.msra.mxu0 %v75
    %951 = vmatprep.subr.mxu0 %v72
    %952 = vmatpush1.msra.mxu0 %v71
    %953 = vmatprep.subr.mxu0 %v68
    %954 = vmatpush1.msra.mxu0 %v67
    %955 = vmatprep.subr.mxu0 %v64
    %956 = vmatpush1.msra.mxu0 %v63
    %957 = vmatprep.subr.mxu0 %v60
    %958 = vmatpush1.msra.mxu0 %v59
    %959 = vmatprep.subr.mxu0 %v56
    %960 = vmatpush1.msra.mxu0 %v55
    %961 = vmatprep.subr.mxu0 %v52
    %962 = vmatpush1.msra.mxu0 %v51
    %963 = vmatprep.subr.mxu0 %v48
    %964 = vmatpush1.msra.mxu0 %v47
    %965 = vmatprep.subr.mxu0 %v44
    %966 = vmatpush1.msra.mxu0 %v43
    %967 = vmatprep.subr.mxu0 %v40
    %968 = vmatpush1.msra.mxu0 %v39
    %969 = vmatprep.subr.mxu0 %v36
    %970 = vmatpush1.msra.mxu0 %v35
    %971 = vmatprep.subr.mxu0 0.0
    %972 = vmatpush2.msra.mxu0 0.0
    %973 = vmatprep.subr.mxu0 0.0
    %974 = vmatpush2.msra.mxu0 0.0
    %975 = vmatprep.subr.mxu0 0.0
    %976 = vmatpush2.msra.mxu0 0.0
    %977 = vmatprep.subr.mxu0 0.0
    %978 = vmatpush2.msra.mxu0 0.0
    %979 = vmatprep.subr.mxu0 0.0
    %980 = vmatpush2.msra.mxu0 0.0
    %981 = vmatprep.subr.mxu0 0.0
    %982 = vmatpush2.msra.mxu0 0.0
    %983 = vmatprep.subr.mxu0 0.0
    %984 = vmatpush2.msra.mxu0 0.0
    %985 = vmatprep.subr.mxu0 0.0
    %986 = vmatpush2.msra.mxu0 0.0
    %987 = vmatprep.subr.mxu0 0.0
    %988 = vmatpush2.msra.mxu0 0.0
    %989 = vmatprep.subr.mxu0 0.0
    %990 = vmatpush2.msra.mxu0 0.0
    %991 = vmatprep.subr.mxu0 0.0
    %992 = vmatpush2.msra.mxu0 0.0
    %993 = vmatprep.subr.mxu0 0.0
    %994 = vmatpush2.msra.mxu0 0.0
    %995 = vmatprep.subr.mxu0 0.0
    %996 = vmatpush2.msra.mxu0 0.0
    %997 = vmatprep.subr.mxu0 0.0
    %998 = vmatpush2.msra.mxu0 0.0
    %999 = vmatprep.subr.mxu0 0.0
    %1000 = vmatpush2.msra.mxu0 0.0
    %1001 = vmatprep.subr.mxu0 0.0
    %1002 = vmatpush2.msra.mxu0 0.0
    %1003 = vmatprep.mubr.f32.mxu0 0.0
    %1004 = vmatmul.mubr.f32.gmra.mxu0 %v934
    %v1005 = vpop.f32.mrf.mxu0
    %v1006 = vadd.f32 0.0, %v1005
    %v1007 = vpop.f32.mrf.mxu0
    %v1008 = vadd.f32 0.0, %v1007
    %1009 = vdwg.mxu0
    %1010 = vmatprep.subr.mxu0 %v98
    %1011 = vmatpush1.msra.mxu0 %v97
    %1012 = vmatprep.subr.mxu0 %v94
    %1013 = vmatpush1.msra.mxu0 %v93
    %1014 = vmatprep.subr.mxu0 %v90
    %1015 = vmatpush1.msra.mxu0 %v89
    %1016 = vmatprep.subr.mxu0 %v86
    %1017 = vmatpush1.msra.mxu0 %v85
    %1018 = vmatprep.subr.mxu0 %v82
    %1019 = vmatpush1.msra.mxu0 %v81
    %1020 = vmatprep.subr.mxu0 %v78
    %1021 = vmatpush1.msra.mxu0 %v77
    %1022 = vmatprep.subr.mxu0 %v74
    %1023 = vmatpush1.msra.mxu0 %v73
    %1024 = vmatprep.subr.mxu0 %v70
    %1025 = vmatpush1.msra.mxu0 %v69
    %1026 = vmatprep.subr.mxu0 %v66
    %1027 = vmatpush1.msra.mxu0 %v65
    %1028 = vmatprep.subr.mxu0 %v62
    %1029 = vmatpush1.msra.mxu0 %v61
    %1030 = vmatprep.subr.mxu0 %v58
    %1031 = vmatpush1.msra.mxu0 %v57
    %1032 = vmatprep.subr.mxu0 %v54
    %1033 = vmatpush1.msra.mxu0 %v53
    %1034 = vmatprep.subr.mxu0 %v50
    %1035 = vmatpush1.msra.mxu0 %v49
    %1036 = vmatprep.subr.mxu0 %v46
    %1037 = vmatpush1.msra.mxu0 %v45
    %1038 = vmatprep.subr.mxu0 %v42
    %1039 = vmatpush1.msra.mxu0 %v41
    %1040 = vmatprep.subr.mxu0 %v38
    %1041 = vmatpush1.msra.mxu0 %v37
    %1042 = vmatprep.subr.mxu0 0.0
    %1043 = vmatpush2.msra.mxu0 0.0
    %1044 = vmatprep.subr.mxu0 0.0
    %1045 = vmatpush2.msra.mxu0 0.0
    %1046 = vmatprep.subr.mxu0 0.0
    %1047 = vmatpush2.msra.mxu0 0.0
    %1048 = vmatprep.subr.mxu0 0.0
    %1049 = vmatpush2.msra.mxu0 0.0
    %1050 = vmatprep.subr.mxu0 0.0
    %1051 = vmatpush2.msra.mxu0 0.0
    %1052 = vmatprep.subr.mxu0 0.0
    %1053 = vmatpush2.msra.mxu0 0.0
    %1054 = vmatprep.subr.mxu0 0.0
    %1055 = vmatpush2.msra.mxu0 0.0
    %1056 = vmatprep.subr.mxu0 0.0
    %1057 = vmatpush2.msra.mxu0 0.0
    %1058 = vmatprep.subr.mxu0 0.0
    %1059 = vmatpush2.msra.mxu0 0.0
    %1060 = vmatprep.subr.mxu0 0.0
    %1061 = vmatpush2.msra.mxu0 0.0
    %1062 = vmatprep.subr.mxu0 0.0
    %1063 = vmatpush2.msra.mxu0 0.0
    %1064 = vmatprep.subr.mxu0 0.0
    %1065 = vmatpush2.msra.mxu0 0.0
    %1066 = vmatprep.subr.mxu0 0.0
    %1067 = vmatpush2.msra.mxu0 0.0
    %1068 = vmatprep.subr.mxu0 0.0
    %1069 = vmatpush2.msra.mxu0 0.0
    %1070 = vmatprep.subr.mxu0 0.0
    %1071 = vmatpush2.msra.mxu0 0.0
    %1072 = vmatprep.subr.mxu0 0.0
    %1073 = vmatpush2.msra.mxu0 0.0
    %1074 = vmatprep.mubr.f32.mxu0 0.0
    %1075 = vmatmul.mubr.f32.gmra.mxu0 %v934
    %v1076 = vpop.f32.mrf.mxu0
    %v1077 = vadd.f32 0.0, %v1076
    %v1078 = vpop.f32.mrf.mxu0
    %v1079 = vadd.f32 0.0, %v1078
    %1080 = vdwg.mxu0
    %v1081 = vadd.f32 %v935, %v1006
    %v1082 = vadd.f32 %v936, %v1008
    %v1083 = vadd.f32 %v937, %v1077
    %v1084 = vadd.f32 %v938, %v1079
    %v1085 = vtanh.pop %v1081
    %v1086 = vtanh.pop %v1082
    %v1087 = vtanh.pop %v1083
    %v1088 = vtanh.pop %v1084
    %v1089 = vadd.f32 %v1085, 1.0
    %v1090 = vmul.f32 %v1089, 0.5
    %v1091 = vadd.f32 %v1086, 1.0
    %v1092 = vmul.f32 %v1091, 0.5
    %v1093 = vadd.f32 %v1088, 1.0
    %v1094 = vmul.f32 %v1093, 0.5
    %v1095 = vmul.f32 %v1092, %v932
    %v1096 = vmul.f32 %v1090, %v1087
    %v1097 = vadd.f32 %v1095, %v1096
    %v1098 = vtanh.pop %v1097
    %v1099 = vmul.f32 %v1094, %v1098
    %v1100 = vld [vmem:[#allocation2 + $0xa0] sm:$0xff]
    %v1101 = vld [vmem:[#allocation2 + $0xa8] sm:$0xff]
    %v1102 = vld [vmem:[#allocation2 + $0xb0] sm:$0xff]
    %v1103 = vld [vmem:[#allocation2 + $0xb8] sm:$0xff]
    %1104 = vmatprep.subr.mxu0 %v96
    %1105 = vmatpush1.msra.mxu0 %v95
    %1106 = vmatprep.subr.mxu0 %v92
    %1107 = vmatpush1.msra.mxu0 %v91
    %1108 = vmatprep.subr.mxu0 %v88
    %1109 = vmatpush1.msra.mxu0 %v87
    %1110 = vmatprep.subr.mxu0 %v84
    %1111 = vmatpush1.msra.mxu0 %v83
    %1112 = vmatprep.subr.mxu0 %v80
    %1113 = vmatpush1.msra.mxu0 %v79
    %1114 = vmatprep.subr.mxu0 %v76
    %1115 = vmatpush1.msra.mxu0 %v75
    %1116 = vmatprep.subr.mxu0 %v72
    %1117 = vmatpush1.msra.mxu0 %v71
    %1118 = vmatprep.subr.mxu0 %v68
    %1119 = vmatpush1.msra.mxu0 %v67
    %1120 = vmatprep.subr.mxu0 %v64
    %1121 = vmatpush1.msra.mxu0 %v63
    %1122 = vmatprep.subr.mxu0 %v60
    %1123 = vmatpush1.msra.mxu0 %v59
    %1124 = vmatprep.subr.mxu0 %v56
    %1125 = vmatpush1.msra.mxu0 %v55
    %1126 = vmatprep.subr.mxu0 %v52
    %1127 = vmatpush1.msra.mxu0 %v51
    %1128 = vmatprep.subr.mxu0 %v48
    %1129 = vmatpush1.msra.mxu0 %v47
    %1130 = vmatprep.subr.mxu0 %v44
    %1131 = vmatpush1.msra.mxu0 %v43
    %1132 = vmatprep.subr.mxu0 %v40
    %1133 = vmatpush1.msra.mxu0 %v39
    %1134 = vmatprep.subr.mxu0 %v36
    %1135 = vmatpush1.msra.mxu0 %v35
    %1136 = vmatprep.subr.mxu0 0.0
    %1137 = vmatpush2.msra.mxu0 0.0
    %1138 = vmatprep.subr.mxu0 0.0
    %1139 = vmatpush2.msra.mxu0 0.0
    %1140 = vmatprep.subr.mxu0 0.0
    %1141 = vmatpush2.msra.mxu0 0.0
    %1142 = vmatprep.subr.mxu0 0.0
    %1143 = vmatpush2.msra.mxu0 0.0
    %1144 = vmatprep.subr.mxu0 0.0
    %1145 = vmatpush2.msra.mxu0 0.0
    %1146 = vmatprep.subr.mxu0 0.0
    %1147 = vmatpush2.msra.mxu0 0.0
    %1148 = vmatprep.subr.mxu0 0.0
    %1149 = vmatpush2.msra.mxu0 0.0
    %1150 = vmatprep.subr.mxu0 0.0
    %1151 = vmatpush2.msra.mxu0 0.0
    %1152 = vmatprep.subr.mxu0 0.0
    %1153 = vmatpush2.msra.mxu0 0.0
    %1154 = vmatprep.subr.mxu0 0.0
    %1155 = vmatpush2.msra.mxu0 0.0
    %1156 = vmatprep.subr.mxu0 0.0
    %1157 = vmatpush2.msra.mxu0 0.0
    %1158 = vmatprep.subr.mxu0 0.0
    %1159 = vmatpush2.msra.mxu0 0.0
    %1160 = vmatprep.subr.mxu0 0.0
    %1161 = vmatpush2.msra.mxu0 0.0
    %1162 = vmatprep.subr.mxu0 0.0
    %1163 = vmatpush2.msra.mxu0 0.0
    %1164 = vmatprep.subr.mxu0 0.0
    %1165 = vmatpush2.msra.mxu0 0.0
    %1166 = vmatprep.subr.mxu0 0.0
    %1167 = vmatpush2.msra.mxu0 0.0
    %1168 = vmatprep.mubr.f32.mxu0 0.0
    %1169 = vmatmul.mubr.f32.gmra.mxu0 %v1099
    %v1170 = vpop.f32.mrf.mxu0
    %v1171 = vadd.f32 0.0, %v1170
    %v1172 = vpop.f32.mrf.mxu0
    %v1173 = vadd.f32 0.0, %v1172
    %1174 = vdwg.mxu0
    %1175 = vmatprep.subr.mxu0 %v98
    %1176 = vmatpush1.msra.mxu0 %v97
    %1177 = vmatprep.subr.mxu0 %v94
    %1178 = vmatpush1.msra.mxu0 %v93
    %1179 = vmatprep.subr.mxu0 %v90
    %1180 = vmatpush1.msra.mxu0 %v89
    %1181 = vmatprep.subr.mxu0 %v86
    %1182 = vmatpush1.msra.mxu0 %v85
    %1183 = vmatprep.subr.mxu0 %v82
    %1184 = vmatpush1.msra.mxu0 %v81
    %1185 = vmatprep.subr.mxu0 %v78
    %1186 = vmatpush1.msra.mxu0 %v77
    %1187 = vmatprep.subr.mxu0 %v74
    %1188 = vmatpush1.msra.mxu0 %v73
    %1189 = vmatprep.subr.mxu0 %v70
    %1190 = vmatpush1.msra.mxu0 %v69
    %1191 = vmatprep.subr.mxu0 %v66
    %1192 = vmatpush1.msra.mxu0 %v65
    %1193 = vmatprep.subr.mxu0 %v62
    %1194 = vmatpush1.msra.mxu0 %v61
    %1195 = vmatprep.subr.mxu0 %v58
    %1196 = vmatpush1.msra.mxu0 %v57
    %1197 = vmatprep.subr.mxu0 %v54
    %1198 = vmatpush1.msra.mxu0 %v53
    %1199 = vmatprep.subr.mxu0 %v50
    %1200 = vmatpush1.msra.mxu0 %v49
    %1201 = vmatprep.subr.mxu0 %v46
    %1202 = vmatpush1.msra.mxu0 %v45
    %1203 = vmatprep.subr.mxu0 %v42
    %1204 = vmatpush1.msra.mxu0 %v41
    %1205 = vmatprep.subr.mxu0 %v38
    %1206 = vmatpush1.msra.mxu0 %v37
    %1207 = vmatprep.subr.mxu0 0.0
    %1208 = vmatpush2.msra.mxu0 0.0
    %1209 = vmatprep.subr.mxu0 0.0
    %1210 = vmatpush2.msra.mxu0 0.0
    %1211 = vmatprep.subr.mxu0 0.0
    %1212 = vmatpush2.msra.mxu0 0.0
    %1213 = vmatprep.subr.mxu0 0.0
    %1214 = vmatpush2.msra.mxu0 0.0
    %1215 = vmatprep.subr.mxu0 0.0
    %1216 = vmatpush2.msra.mxu0 0.0
    %1217 = vmatprep.subr.mxu0 0.0
    %1218 = vmatpush2.msra.mxu0 0.0
    %1219 = vmatprep.subr.mxu0 0.0
    %1220 = vmatpush2.msra.mxu0 0.0
    %1221 = vmatprep.subr.mxu0 0.0
    %1222 = vmatpush2.msra.mxu0 0.0
    %1223 = vmatprep.subr.mxu0 0.0
    %1224 = vmatpush2.msra.mxu0 0.0
    %1225 = vmatprep.subr.mxu0 0.0
    %1226 = vmatpush2.msra.mxu0 0.0
    %1227 = vmatprep.subr.mxu0 0.0
    %1228 = vmatpush2.msra.mxu0 0.0
    %1229 = vmatprep.subr.mxu0 0.0
    %1230 = vmatpush2.msra.mxu0 0.0
    %1231 = vmatprep.subr.mxu0 0.0
    %1232 = vmatpush2.msra.mxu0 0.0
    %1233 = vmatprep.subr.mxu0 0.0
    %1234 = vmatpush2.msra.mxu0 0.0
    %1235 = vmatprep.subr.mxu0 0.0
    %1236 = vmatpush2.msra.mxu0 0.0
    %1237 = vmatprep.subr.mxu0 0.0
    %1238 = vmatpush2.msra.mxu0 0.0
    %1239 = vmatprep.mubr.f32.mxu0 0.0
    %1240 = vmatmul.mubr.f32.gmra.mxu0 %v1099
    %v1241 = vpop.f32.mrf.mxu0
    %v1242 = vadd.f32 0.0, %v1241
    %v1243 = vpop.f32.mrf.mxu0
    %v1244 = vadd.f32 0.0, %v1243
    %1245 = vdwg.mxu0
    %v1246 = vadd.f32 %v1100, %v1171
    %v1247 = vadd.f32 %v1101, %v1173
    %v1248 = vadd.f32 %v1102, %v1242
    %v1249 = vadd.f32 %v1103, %v1244
    %v1250 = vtanh.pop %v1246
    %v1251 = vtanh.pop %v1247
    %v1252 = vtanh.pop %v1248
    %v1253 = vtanh.pop %v1249
    %v1254 = vadd.f32 %v1250, 1.0
    %v1255 = vmul.f32 %v1254, 0.5
    %v1256 = vadd.f32 %v1251, 1.0
    %v1257 = vmul.f32 %v1256, 0.5
    %v1258 = vadd.f32 %v1253, 1.0
    %v1259 = vmul.f32 %v1258, 0.5
    %v1260 = vmul.f32 %v1257, %v1097
    %v1261 = vmul.f32 %v1255, %v1252
    %v1262 = vadd.f32 %v1260, %v1261
    %v1263 = vtanh.pop %v1262
    %v1264 = vmul.f32 %v1259, %v1263
    %v1265 = vld [vmem:[#allocation2 + $0xc0] sm:$0xff]
    %v1266 = vld [vmem:[#allocation2 + $0xc8] sm:$0xff]
    %v1267 = vld [vmem:[#allocation2 + $0xd0] sm:$0xff]
    %v1268 = vld [vmem:[#allocation2 + $0xd8] sm:$0xff]
    %1269 = vmatprep.subr.mxu0 %v96
    %1270 = vmatpush1.msra.mxu0 %v95
    %1271 = vmatprep.subr.mxu0 %v92
    %1272 = vmatpush1.msra.mxu0 %v91
    %1273 = vmatprep.subr.mxu0 %v88
    %1274 = vmatpush1.msra.mxu0 %v87
    %1275 = vmatprep.subr.mxu0 %v84
    %1276 = vmatpush1.msra.mxu0 %v83
    %1277 = vmatprep.subr.mxu0 %v80
    %1278 = vmatpush1.msra.mxu0 %v79
    %1279 = vmatprep.subr.mxu0 %v76
    %1280 = vmatpush1.msra.mxu0 %v75
    %1281 = vmatprep.subr.mxu0 %v72
    %1282 = vmatpush1.msra.mxu0 %v71
    %1283 = vmatprep.subr.mxu0 %v68
    %1284 = vmatpush1.msra.mxu0 %v67
    %1285 = vmatprep.subr.mxu0 %v64
    %1286 = vmatpush1.msra.mxu0 %v63
    %1287 = vmatprep.subr.mxu0 %v60
    %1288 = vmatpush1.msra.mxu0 %v59
    %1289 = vmatprep.subr.mxu0 %v56
    %1290 = vmatpush1.msra.mxu0 %v55
    %1291 = vmatprep.subr.mxu0 %v52
    %1292 = vmatpush1.msra.mxu0 %v51
    %1293 = vmatprep.subr.mxu0 %v48
    %1294 = vmatpush1.msra.mxu0 %v47
    %1295 = vmatprep.subr.mxu0 %v44
    %1296 = vmatpush1.msra.mxu0 %v43
    %1297 = vmatprep.subr.mxu0 %v40
    %1298 = vmatpush1.msra.mxu0 %v39
    %1299 = vmatprep.subr.mxu0 %v36
    %1300 = vmatpush1.msra.mxu0 %v35
    %1301 = vmatprep.subr.mxu0 0.0
    %1302 = vmatpush2.msra.mxu0 0.0
    %1303 = vmatprep.subr.mxu0 0.0
    %1304 = vmatpush2.msra.mxu0 0.0
    %1305 = vmatprep.subr.mxu0 0.0
    %1306 = vmatpush2.msra.mxu0 0.0
    %1307 = vmatprep.subr.mxu0 0.0
    %1308 = vmatpush2.msra.mxu0 0.0
    %1309 = vmatprep.subr.mxu0 0.0
    %1310 = vmatpush2.msra.mxu0 0.0
    %1311 = vmatprep.subr.mxu0 0.0
    %1312 = vmatpush2.msra.mxu0 0.0
    %1313 = vmatprep.subr.mxu0 0.0
    %1314 = vmatpush2.msra.mxu0 0.0
    %1315 = vmatprep.subr.mxu0 0.0
    %1316 = vmatpush2.msra.mxu0 0.0
    %1317 = vmatprep.subr.mxu0 0.0
    %1318 = vmatpush2.msra.mxu0 0.0
    %1319 = vmatprep.subr.mxu0 0.0
    %1320 = vmatpush2.msra.mxu0 0.0
    %1321 = vmatprep.subr.mxu0 0.0
    %1322 = vmatpush2.msra.mxu0 0.0
    %1323 = vmatprep.subr.mxu0 0.0
    %1324 = vmatpush2.msra.mxu0 0.0
    %1325 = vmatprep.subr.mxu0 0.0
    %1326 = vmatpush2.msra.mxu0 0.0
    %1327 = vmatprep.subr.mxu0 0.0
    %1328 = vmatpush2.msra.mxu0 0.0
    %1329 = vmatprep.subr.mxu0 0.0
    %1330 = vmatpush2.msra.mxu0 0.0
    %1331 = vmatprep.subr.mxu0 0.0
    %1332 = vmatpush2.msra.mxu0 0.0
    %1333 = vmatprep.mubr.f32.mxu0 0.0
    %1334 = vmatmul.mubr.f32.gmra.mxu0 %v1264
    %v1335 = vpop.f32.mrf.mxu0
    %v1336 = vadd.f32 0.0, %v1335
    %v1337 = vpop.f32.mrf.mxu0
    %v1338 = vadd.f32 0.0, %v1337
    %1339 = vdwg.mxu0
    %1340 = vmatprep.subr.mxu0 %v98
    %1341 = vmatpush1.msra.mxu0 %v97
    %1342 = vmatprep.subr.mxu0 %v94
    %1343 = vmatpush1.msra.mxu0 %v93
    %1344 = vmatprep.subr.mxu0 %v90
    %1345 = vmatpush1.msra.mxu0 %v89
    %1346 = vmatprep.subr.mxu0 %v86
    %1347 = vmatpush1.msra.mxu0 %v85
    %1348 = vmatprep.subr.mxu0 %v82
    %1349 = vmatpush1.msra.mxu0 %v81
    %1350 = vmatprep.subr.mxu0 %v78
    %1351 = vmatpush1.msra.mxu0 %v77
    %1352 = vmatprep.subr.mxu0 %v74
    %1353 = vmatpush1.msra.mxu0 %v73
    %1354 = vmatprep.subr.mxu0 %v70
    %1355 = vmatpush1.msra.mxu0 %v69
    %1356 = vmatprep.subr.mxu0 %v66
    %1357 = vmatpush1.msra.mxu0 %v65
    %1358 = vmatprep.subr.mxu0 %v62
    %1359 = vmatpush1.msra.mxu0 %v61
    %1360 = vmatprep.subr.mxu0 %v58
    %1361 = vmatpush1.msra.mxu0 %v57
    %1362 = vmatprep.subr.mxu0 %v54
    %1363 = vmatpush1.msra.mxu0 %v53
    %1364 = vmatprep.subr.mxu0 %v50
    %1365 = vmatpush1.msra.mxu0 %v49
    %1366 = vmatprep.subr.mxu0 %v46
    %1367 = vmatpush1.msra.mxu0 %v45
    %1368 = vmatprep.subr.mxu0 %v42
    %1369 = vmatpush1.msra.mxu0 %v41
    %1370 = vmatprep.subr.mxu0 %v38
    %1371 = vmatpush1.msra.mxu0 %v37
    %1372 = vmatprep.subr.mxu0 0.0
    %1373 = vmatpush2.msra.mxu0 0.0
    %1374 = vmatprep.subr.mxu0 0.0
    %1375 = vmatpush2.msra.mxu0 0.0
    %1376 = vmatprep.subr.mxu0 0.0
    %1377 = vmatpush2.msra.mxu0 0.0
    %1378 = vmatprep.subr.mxu0 0.0
    %1379 = vmatpush2.msra.mxu0 0.0
    %1380 = vmatprep.subr.mxu0 0.0
    %1381 = vmatpush2.msra.mxu0 0.0
    %1382 = vmatprep.subr.mxu0 0.0
    %1383 = vmatpush2.msra.mxu0 0.0
    %1384 = vmatprep.subr.mxu0 0.0
    %1385 = vmatpush2.msra.mxu0 0.0
    %1386 = vmatprep.subr.mxu0 0.0
    %1387 = vmatpush2.msra.mxu0 0.0
    %1388 = vmatprep.subr.mxu0 0.0
    %1389 = vmatpush2.msra.mxu0 0.0
    %1390 = vmatprep.subr.mxu0 0.0
    %1391 = vmatpush2.msra.mxu0 0.0
    %1392 = vmatprep.subr.mxu0 0.0
    %1393 = vmatpush2.msra.mxu0 0.0
    %1394 = vmatprep.subr.mxu0 0.0
    %1395 = vmatpush2.msra.mxu0 0.0
    %1396 = vmatprep.subr.mxu0 0.0
    %1397 = vmatpush2.msra.mxu0 0.0
    %1398 = vmatprep.subr.mxu0 0.0
    %1399 = vmatpush2.msra.mxu0 0.0
    %1400 = vmatprep.subr.mxu0 0.0
    %1401 = vmatpush2.msra.mxu0 0.0
    %1402 = vmatprep.subr.mxu0 0.0
    %1403 = vmatpush2.msra.mxu0 0.0
    %1404 = vmatprep.mubr.f32.mxu0 0.0
    %1405 = vmatmul.mubr.f32.gmra.mxu0 %v1264
    %v1406 = vpop.f32.mrf.mxu0
    %v1407 = vadd.f32 0.0, %v1406
    %v1408 = vpop.f32.mrf.mxu0
    %v1409 = vadd.f32 0.0, %v1408
    %1410 = vdwg.mxu0
    %v1411 = vadd.f32 %v1265, %v1336
    %v1412 = vadd.f32 %v1266, %v1338
    %v1413 = vadd.f32 %v1267, %v1407
    %v1414 = vadd.f32 %v1268, %v1409
    %v1415 = vtanh.pop %v1411
    %v1416 = vtanh.pop %v1412
    %v1417 = vtanh.pop %v1413
    %v1418 = vtanh.pop %v1414
    %v1419 = vadd.f32 %v1415, 1.0
    %v1420 = vmul.f32 %v1419, 0.5
    %v1421 = vadd.f32 %v1416, 1.0
    %v1422 = vmul.f32 %v1421, 0.5
    %v1423 = vadd.f32 %v1418, 1.0
    %v1424 = vmul.f32 %v1423, 0.5
    %v1425 = vmul.f32 %v1422, %v1262
    %v1426 = vmul.f32 %v1420, %v1417
    %v1427 = vadd.f32 %v1425, %v1426
    %v1428 = vtanh.pop %v1427
    %v1429 = vmul.f32 %v1424, %v1428
    %v1430 = vld [vmem:[#allocation2 + $0xe0] sm:$0xff]
    %v1431 = vld [vmem:[#allocation2 + $0xe8] sm:$0xff]
    %v1432 = vld [vmem:[#allocation2 + $0xf0] sm:$0xff]
    %1433 = vmatprep.subr.mxu0 %v96
    %1434 = vmatpush1.msra.mxu0 %v95
    %1435 = vmatprep.subr.mxu0 %v92
    %1436 = vmatpush1.msra.mxu0 %v91
    %1437 = vmatprep.subr.mxu0 %v88
    %1438 = vmatpush1.msra.mxu0 %v87
    %1439 = vmatprep.subr.mxu0 %v84
    %1440 = vmatpush1.msra.mxu0 %v83
    %1441 = vmatprep.subr.mxu0 %v80
    %1442 = vmatpush1.msra.mxu0 %v79
    %1443 = vmatprep.subr.mxu0 %v76
    %1444 = vmatpush1.msra.mxu0 %v75
    %1445 = vmatprep.subr.mxu0 %v72
    %1446 = vmatpush1.msra.mxu0 %v71
    %1447 = vmatprep.subr.mxu0 %v68
    %1448 = vmatpush1.msra.mxu0 %v67
    %1449 = vmatprep.subr.mxu0 %v64
    %1450 = vmatpush1.msra.mxu0 %v63
    %1451 = vmatprep.subr.mxu0 %v60
    %1452 = vmatpush1.msra.mxu0 %v59
    %1453 = vmatprep.subr.mxu0 %v56
    %1454 = vmatpush1.msra.mxu0 %v55
    %1455 = vmatprep.subr.mxu0 %v52
    %1456 = vmatpush1.msra.mxu0 %v51
    %1457 = vmatprep.subr.mxu0 %v48
    %1458 = vmatpush1.msra.mxu0 %v47
    %1459 = vmatprep.subr.mxu0 %v44
    %1460 = vmatpush1.msra.mxu0 %v43
    %1461 = vmatprep.subr.mxu0 %v40
    %1462 = vmatpush1.msra.mxu0 %v39
    %1463 = vmatprep.subr.mxu0 %v36
    %1464 = vmatpush1.msra.mxu0 %v35
    %1465 = vmatprep.subr.mxu0 0.0
    %1466 = vmatpush2.msra.mxu0 0.0
    %1467 = vmatprep.subr.mxu0 0.0
    %1468 = vmatpush2.msra.mxu0 0.0
    %1469 = vmatprep.subr.mxu0 0.0
    %1470 = vmatpush2.msra.mxu0 0.0
    %1471 = vmatprep.subr.mxu0 0.0
    %1472 = vmatpush2.msra.mxu0 0.0
    %1473 = vmatprep.subr.mxu0 0.0
    %1474 = vmatpush2.msra.mxu0 0.0
    %1475 = vmatprep.subr.mxu0 0.0
    %1476 = vmatpush2.msra.mxu0 0.0
    %1477 = vmatprep.subr.mxu0 0.0
    %1478 = vmatpush2.msra.mxu0 0.0
    %1479 = vmatprep.subr.mxu0 0.0
    %1480 = vmatpush2.msra.mxu0 0.0
    %1481 = vmatprep.subr.mxu0 0.0
    %1482 = vmatpush2.msra.mxu0 0.0
    %1483 = vmatprep.subr.mxu0 0.0
    %1484 = vmatpush2.msra.mxu0 0.0
    %1485 = vmatprep.subr.mxu0 0.0
    %1486 = vmatpush2.msra.mxu0 0.0
    %1487 = vmatprep.subr.mxu0 0.0
    %1488 = vmatpush2.msra.mxu0 0.0
    %1489 = vmatprep.subr.mxu0 0.0
    %1490 = vmatpush2.msra.mxu0 0.0
    %1491 = vmatprep.subr.mxu0 0.0
    %1492 = vmatpush2.msra.mxu0 0.0
    %1493 = vmatprep.subr.mxu0 0.0
    %1494 = vmatpush2.msra.mxu0 0.0
    %1495 = vmatprep.subr.mxu0 0.0
    %1496 = vmatpush2.msra.mxu0 0.0
    %1497 = vmatprep.mubr.f32.mxu0 0.0
    %1498 = vmatmul.mubr.f32.gmra.mxu0 %v1429
    %v1499 = vpop.f32.mrf.mxu0
    %v1500 = vadd.f32 0.0, %v1499
    %v1501 = vpop.f32.mrf.mxu0
    %v1502 = vadd.f32 0.0, %v1501
    %1503 = vdwg.mxu0
    %1504 = vmatprep.subr.mxu0 %v98
    %1505 = vmatpush1.msra.mxu0 %v97
    %1506 = vmatprep.subr.mxu0 %v94
    %1507 = vmatpush1.msra.mxu0 %v93
    %1508 = vmatprep.subr.mxu0 %v90
    %1509 = vmatpush1.msra.mxu0 %v89
    %1510 = vmatprep.subr.mxu0 %v86
    %1511 = vmatpush1.msra.mxu0 %v85
    %1512 = vmatprep.subr.mxu0 %v82
    %1513 = vmatpush1.msra.mxu0 %v81
    %1514 = vmatprep.subr.mxu0 %v78
    %1515 = vmatpush1.msra.mxu0 %v77
    %1516 = vmatprep.subr.mxu0 %v74
    %1517 = vmatpush1.msra.mxu0 %v73
    %1518 = vmatprep.subr.mxu0 %v70
    %1519 = vmatpush1.msra.mxu0 %v69
    %1520 = vmatprep.subr.mxu0 %v66
    %1521 = vmatpush1.msra.mxu0 %v65
    %1522 = vmatprep.subr.mxu0 %v62
    %1523 = vmatpush1.msra.mxu0 %v61
    %1524 = vmatprep.subr.mxu0 %v58
    %1525 = vmatpush1.msra.mxu0 %v57
    %1526 = vmatprep.subr.mxu0 %v54
    %1527 = vmatpush1.msra.mxu0 %v53
    %1528 = vmatprep.subr.mxu0 %v50
    %1529 = vmatpush1.msra.mxu0 %v49
    %1530 = vmatprep.subr.mxu0 %v46
    %1531 = vmatpush1.msra.mxu0 %v45
    %1532 = vmatprep.subr.mxu0 %v42
    %1533 = vmatpush1.msra.mxu0 %v41
    %1534 = vmatprep.subr.mxu0 %v38
    %1535 = vmatpush1.msra.mxu0 %v37
    %1536 = vmatprep.subr.mxu0 0.0
    %1537 = vmatpush2.msra.mxu0 0.0
    %1538 = vmatprep.subr.mxu0 0.0
    %1539 = vmatpush2.msra.mxu0 0.0
    %1540 = vmatprep.subr.mxu0 0.0
    %1541 = vmatpush2.msra.mxu0 0.0
    %1542 = vmatprep.subr.mxu0 0.0
    %1543 = vmatpush2.msra.mxu0 0.0
    %1544 = vmatprep.subr.mxu0 0.0
    %1545 = vmatpush2.msra.mxu0 0.0
    %1546 = vmatprep.subr.mxu0 0.0
    %1547 = vmatpush2.msra.mxu0 0.0
    %1548 = vmatprep.subr.mxu0 0.0
    %1549 = vmatpush2.msra.mxu0 0.0
    %1550 = vmatprep.subr.mxu0 0.0
    %1551 = vmatpush2.msra.mxu0 0.0
    %1552 = vmatprep.subr.mxu0 0.0
    %1553 = vmatpush2.msra.mxu0 0.0
    %1554 = vmatprep.subr.mxu0 0.0
    %1555 = vmatpush2.msra.mxu0 0.0
    %1556 = vmatprep.subr.mxu0 0.0
    %1557 = vmatpush2.msra.mxu0 0.0
    %1558 = vmatprep.subr.mxu0 0.0
    %1559 = vmatpush2.msra.mxu0 0.0
    %1560 = vmatprep.subr.mxu0 0.0
    %1561 = vmatpush2.msra.mxu0 0.0
    %1562 = vmatprep.subr.mxu0 0.0
    %1563 = vmatpush2.msra.mxu0 0.0
    %1564 = vmatprep.subr.mxu0 0.0
    %1565 = vmatpush2.msra.mxu0 0.0
    %1566 = vmatprep.subr.mxu0 0.0
    %1567 = vmatpush2.msra.mxu0 0.0
    %1568 = vmatprep.mubr.f32.mxu0 0.0
    %1569 = vmatmul.mubr.f32.gmra.mxu0 %v1429
    %v1570 = vpop.f32.mrf.mxu0
    %v1571 = vadd.f32 0.0, %v1570
    %v1572 = vpop.f32.mrf.mxu0
    %1573 = vdwg.mxu0
    %v1574 = vadd.f32 %v1430, %v1500
    %v1575 = vadd.f32 %v1431, %v1502
    %v1576 = vadd.f32 %v1432, %v1571
    %v1577 = vtanh.pop %v1574
    %v1578 = vtanh.pop %v1575
    %v1579 = vtanh.pop %v1576
    %v1580 = vadd.f32 %v1577, 1.0
    %v1581 = vmul.f32 %v1580, 0.5
    %v1582 = vadd.f32 %v1578, 1.0
    %v1583 = vmul.f32 %v1582, 0.5
    %v1584 = vmul.f32 %v1583, %v1427
    %v1585 = vmul.f32 %v1581, %v1579
    %v1586 = vadd.f32 %v1584, %v1585
    %1587 = vst [vmem:[#allocation6] sm:$0xff] %v1586
    // Predicated region
    $region26: #{tpu_custom_call.1} parent=1 // pred_check
      _
    $region27: #{tpu_custom_call.1} parent=1 // pred_check_branch
      %1589 = sbr.rel (0) target = $region29
    $region28: #{tpu_custom_call.1} parent=1 // pred_region
      %s1591 = ssub.s32 128, 128
      %1592 = vsyncadd [#allocation5], %s1591
      %s1594 = sshll.u32 [#allocation6], 4
      %s1595 = int_to_ptr.vmem [resolvable:$true] %s1594
      %1597 = dma.vmem_to_hbm [thread:$0]  %s1595, 128, %s5, [#allocation5]
    $region29: #{tpu_custom_call.1} parent=1 // pred_fallthru
      _
    // Predicated region
    $region30: #{tpu_custom_call.1} parent=1 // pred_check
      _
    $region31: #{tpu_custom_call.1} parent=1 // pred_check_branch
      %1599 = sbr.rel (0) target = $region33
    $region32: #{tpu_custom_call.1} parent=1 // pred_region
      %1600 = dma.done [#allocation5], 128
    $region33: #{tpu_custom_call.1} parent=1 // pred_fallthru
      _
    %1601 = vsyncpa [#allocation4], 1
    %1602 = vsyncpa [#allocation5], 1

</llo_original>
